<compile_context>
chip_gen: v5e
topology: v5e:2x2
jax: 0.10.0
libtpu: 0.0.40
codegen_flags: <defaults>
</compile_context>

<pallas_src>
import jax
import jax.numpy as jnp
from jax import lax
from jax.experimental import pallas as pl
from jax.experimental.pallas import tpu as pltpu


def _lstm_classifier_kernel(x_ref, wih_ref, whh_ref, b_ref, wfc_ref, bfc_ref,
                            out_ref, xw_scr):
    Bp = out_ref.shape[0]                    # padded batch (multiple of 8)
    T = x_ref.shape[0] // Bp                 # sequence length
    H = whh_ref.shape[0]                     # hidden size

    # Hoisted input projection: one MXU call for all T steps, bias folded in.
    # x_ref: (T*Bp, D) bf16, wih_ref: (D, 4H) bf16, b_ref: (1, 4H) f32.
    xw_scr[...] = (
        jnp.dot(x_ref[...], wih_ref[...], preferred_element_type=jnp.float32)
        + b_ref[...])

    def step(t, carry):
        h, c = carry                                         # f32 (Bp, H)
        row = pl.multiple_of(t * Bp, 8)                      # aligned sublane slice
        gates = xw_scr[pl.ds(row, Bp), :] + jnp.dot(
            h.astype(jnp.bfloat16), whh_ref[...],
            preferred_element_type=jnp.float32)              # (Bp, 4H) f32

        # PyTorch gate ordering: input, forget, cell(g), output.
        i_g = jax.nn.sigmoid(gates[:, 0 * H:1 * H])
        f_g = jax.nn.sigmoid(gates[:, 1 * H:2 * H])
        g_g = jnp.tanh(gates[:, 2 * H:3 * H])
        o_g = jax.nn.sigmoid(gates[:, 3 * H:4 * H])

        c_new = f_g * c + i_g * g_g
        h_new = o_g * jnp.tanh(c_new)
        return h_new, c_new

    h0 = jnp.zeros((Bp, H), jnp.float32)
    c0 = jnp.zeros((Bp, H), jnp.float32)
    h_T, _ = lax.fori_loop(0, T, step, (h0, c0), unroll=True)

    # Fused FC head on the last hidden state; lane-dense (Bp, Cp) store.
    logits = (jnp.dot(h_T.astype(jnp.bfloat16), wfc_ref[...],
                      preferred_element_type=jnp.float32)
              + bfc_ref[...])
    out_ref[...] = logits.astype(out_ref.dtype)


def lstm_classifier_forward(x, w_ih, w_hh, b_ih, b_hh, w_fc, b_fc):
    """x: (T, B, D) f32.  Weights in PyTorch nn.LSTM / nn.Linear layout:
       w_ih (4H, D), w_hh (4H, H), b_ih/b_hh (4H,), w_fc (C, H), b_fc (C,).
       Returns (B, C) f32 == LSTM_Classifier.forward(x)."""
    T, B, D = x.shape
    H = w_hh.shape[1]
    C = w_fc.shape[0]

    Bp = max(8, ((B + 7) // 8) * 8)         # batch padded to sublane multiple
    Cp = max(128, ((C + 127) // 128) * 128)  # classes padded to lane width

    # Pad batch with zero rows (rows are independent through the whole net),
    # flatten time into rows, cast matmul operands to bf16 (f32 accumulate).
    xp = jnp.zeros((T, Bp, D), jnp.float32).at[:, :B, :].set(x)
    xp = xp.reshape(T * Bp, D).astype(jnp.bfloat16)

    wih_t = w_ih.T.astype(jnp.bfloat16)                       # (D, 4H)
    whh_t = w_hh.T.astype(jnp.bfloat16)                       # (H, 4H)
    b = (b_ih + b_hh).reshape(1, 4 * H).astype(jnp.float32)   # (1, 4H)
    wfc_t = jnp.zeros((H, Cp), jnp.bfloat16).at[:, :C].set(
        w_fc.T.astype(jnp.bfloat16))                          # (H, Cp)
    bfc = jnp.zeros((1, Cp), jnp.float32).at[:, :C].set(
        b_fc.reshape(1, C).astype(jnp.float32))               # (1, Cp)

    grid_spec = pltpu.PrefetchScalarGridSpec(
        num_scalar_prefetch=0,
        grid=(1,),                                   # single invocation; time loop is in-kernel
        in_specs=[
            pl.BlockSpec((T * Bp, D), lambda i: (0, 0)),      # x slab
            pl.BlockSpec((D, 4 * H), lambda i: (0, 0)),       # W_ih^T
            pl.BlockSpec((H, 4 * H), lambda i: (0, 0)),       # W_hh^T
            pl.BlockSpec((1, 4 * H), lambda i: (0, 0)),       # b_ih + b_hh
            pl.BlockSpec((H, Cp), lambda i: (0, 0)),          # W_fc^T (padded)
            pl.BlockSpec((1, Cp), lambda i: (0, 0)),          # b_fc (padded)
        ],
        out_specs=pl.BlockSpec((Bp, Cp), lambda i: (0, 0)),
        scratch_shapes=[
            pltpu.VMEM((T * Bp, 4 * H), jnp.float32),         # hoisted x@W_ih^T + b
        ],
    )

    out = pl.pallas_call(
        _lstm_classifier_kernel,
        out_shape=jax.ShapeDtypeStruct((Bp, Cp), jnp.float32),
        grid_spec=grid_spec,
        compiler_params=pltpu.CompilerParams(
            dimension_semantics=("arbitrary",)),
    )(xp, wih_t, whh_t, b, wfc_t, bfc)

    return out[:B, :C]


def reference_forward(x, w_ih, w_hh, b_ih, b_hh, w_fc, b_fc):
    """Pure-JAX f32 reference mirroring torch.nn.LSTM + nn.Linear."""
    T, B, D = x.shape
    H = w_hh.shape[1]

    def step(carry, x_t):
        h, c = carry
        gates = x_t @ w_ih.T + h @ w_hh.T + b_ih + b_hh
        i_g = jax.nn.sigmoid(gates[:, 0 * H:1 * H])
        f_g = jax.nn.sigmoid(gates[:, 1 * H:2 * H])
        g_g = jnp.tanh(gates[:, 2 * H:3 * H])
        o_g = jax.nn.sigmoid(gates[:, 3 * H:4 * H])
        c_new = f_g * c + i_g * g_g
        h_new = o_g * jnp.tanh(c_new)
        return (h_new, c_new), None

    h0 = jnp.zeros((B, H), jnp.float32)
    c0 = jnp.zeros((B, H), jnp.float32)
    (h_T, _), _ = lax.scan(step, (h0, c0), x)
    return h_T @ w_fc.T + b_fc


if __name__ == "__main__":
    # Shapes consistent with the module: input_size=28, hidden=128, classes=10.
    T, B, D_IN, H, CLASSES = 8, 4, 28, 128, 10

    key = jax.random.PRNGKey(0)
    ks = jax.random.split(key, 7)
    bound = 1.0 / (H ** 0.5)   # PyTorch default uniform init range

    x = jax.random.normal(ks[0], (T, B, D_IN), jnp.float32)
    w_ih = jax.random.uniform(ks[1], (4 * H, D_IN), jnp.float32, -bound, bound)
    w_hh = jax.random.uniform(ks[2], (4 * H, H), jnp.float32, -bound, bound)
    b_ih = jax.random.uniform(ks[3], (4 * H,), jnp.float32, -bound, bound)
    b_hh = jax.random.uniform(ks[4], (4 * H,), jnp.float32, -bound, bound)
    w_fc = jax.random.uniform(ks[5], (CLASSES, H), jnp.float32, -bound, bound)
    b_fc = jax.random.uniform(ks[6], (CLASSES,), jnp.float32, -bound, bound)

    out = lstm_classifier_forward(x, w_ih, w_hh, b_ih, b_hh, w_fc, b_fc)
    out = jax.block_until_ready(out)

    ref = reference_forward(x, w_ih, w_hh, b_ih, b_hh, w_fc, b_fc)
    assert out.shape == (B, CLASSES)
    # bf16 MXU operands (f32 accumulate) -> loosened tolerance vs the f32 reference.
    max_diff = float(jnp.max(jnp.abs(out - ref)))
    assert jnp.allclose(out, ref, atol=2e-2, rtol=2e-2), f"mismatch vs reference (max abs diff {max_diff})"

    print("KERNEL_OK")
</pallas_src>

<mosaic_0001>
module attributes {stable_mosaic.version = 11 : i64} {
  func.func @_lstm_classifier_kernel(%arg0: i32, %arg1: memref<64x28xbf16, #tpu.memory_space<vmem>>, %arg2: memref<28x512xbf16, #tpu.memory_space<vmem>>, %arg3: memref<128x512xbf16, #tpu.memory_space<vmem>>, %arg4: memref<1x512xf32, #tpu.memory_space<vmem>>, %arg5: memref<128x128xbf16, #tpu.memory_space<vmem>>, %arg6: memref<1x128xf32, #tpu.memory_space<vmem>>, %arg7: memref<8x128xf32, #tpu.memory_space<vmem>>, %arg8: memref<64x512xf32, #tpu.memory_space<vmem>>) attributes {dimension_semantics = [#tpu.dimension_semantics<arbitrary>], iteration_bounds = array<i64: 1>, scalar_prefetch = 0 : i64, scratch_operands = 1 : i64, tpu.core_type = #tpu.core_type<tc>, window_params = [{pipeline_mode = #tpu.pipeline_mode<synchronous>, transform_indices = @transform_0, window_bounds = array<i64: 64, 28>}, {pipeline_mode = #tpu.pipeline_mode<synchronous>, transform_indices = @transform_1, window_bounds = array<i64: 28, 512>}, {pipeline_mode = #tpu.pipeline_mode<synchronous>, transform_indices = @transform_2, window_bounds = array<i64: 128, 512>}, {pipeline_mode = #tpu.pipeline_mode<synchronous>, transform_indices = @transform_3, window_bounds = array<i64: 1, 512>}, {pipeline_mode = #tpu.pipeline_mode<synchronous>, transform_indices = @transform_4, window_bounds = array<i64: 128, 128>}, {pipeline_mode = #tpu.pipeline_mode<synchronous>, transform_indices = @transform_5, window_bounds = array<i64: 1, 128>}, {pipeline_mode = #tpu.pipeline_mode<synchronous>, transform_indices = @transform_6, window_bounds = array<i64: 8, 128>}]} {
    %c0 = arith.constant 0 : index
    %c0_0 = arith.constant 0 : index
    %0 = vector.load %arg1[%c0, %c0_0] : memref<64x28xbf16, #tpu.memory_space<vmem>>, vector<64x28xbf16>
    %c0_1 = arith.constant 0 : index
    %c0_2 = arith.constant 0 : index
    %1 = vector.load %arg2[%c0_1, %c0_2] : memref<28x512xbf16, #tpu.memory_space<vmem>>, vector<28x512xbf16>
    %cst = arith.constant dense<0.000000e+00> : vector<64x512xf32>
    %2 = tpu.matmul %0, %1, %cst {dimension_numbers = #tpu.dot_dimension_numbers<[1], [0], [0], [1], [0, 0, 1, 1], [], []>} : vector<64x28xbf16>, vector<28x512xbf16>, vector<64x512xf32> -> vector<64x512xf32>
    %c0_3 = arith.constant 0 : index
    %c0_4 = arith.constant 0 : index
    %3 = vector.load %arg4[%c0_3, %c0_4] : memref<1x512xf32, #tpu.memory_space<vmem>>, vector<1x512xf32>
    %4 = vector.broadcast %3 : vector<1x512xf32> to vector<64x512xf32>
    %5 = arith.addf %2, %4 : vector<64x512xf32>
    %c0_5 = arith.constant 0 : index
    %c0_6 = arith.constant 0 : index
    %6 = vector.load %arg8[%c0_5, %c0_6] : memref<64x512xf32, #tpu.memory_space<vmem>>, vector<64x512xf32>
    tpu.vector_store %arg8[%c0_5, %c0_6], %5 {strides = array<i32>} : memref<64x512xf32, #tpu.memory_space<vmem>>, vector<64x512xf32>,
    %cst_7 = arith.constant 0.000000e+00 : f32
    %7 = vector.broadcast %cst_7 : f32 to vector<8x128xf32>
    %cst_8 = arith.constant 0.000000e+00 : f32
    %8 = vector.broadcast %cst_8 : f32 to vector<8x128xf32>
    %c0_i32 = arith.constant 0 : i32
    %c8_i32 = arith.constant 8 : i32
    %9 = arith.muli %c0_i32, %c8_i32 : i32
    %10 = tpu.assume_multiple %9, 8 : i32
    %11 = arith.index_cast %10 : i32 to index
    %c0_9 = arith.constant 0 : index
    %12 = vector.load %arg8[%11, %c0_9] : memref<64x512xf32, #tpu.memory_space<vmem>>, vector<8x512xf32>
    %13 = arith.truncf %7 : vector<8x128xf32> to vector<8x128xbf16>
    %c0_10 = arith.constant 0 : index
    %c0_11 = arith.constant 0 : index
    %14 = vector.load %arg3[%c0_10, %c0_11] : memref<128x512xbf16, #tpu.memory_space<vmem>>, vector<128x512xbf16>
    %cst_12 = arith.constant dense<0.000000e+00> : vector<8x512xf32>
    %15 = tpu.matmul %13, %14, %cst_12 {dimension_numbers = #tpu.dot_dimension_numbers<[1], [0], [0], [1], [0, 0, 1, 1], [], []>} : vector<8x128xbf16>, vector<128x512xbf16>, vector<8x512xf32> -> vector<8x512xf32>
    %16 = arith.addf %12, %15 : vector<8x512xf32>
    %17 = vector.extract_strided_slice %16 {offsets = [0, 0], sizes = [8, 128], strides = [1, 1]} : vector<8x512xf32> to vector<8x128xf32>
    %18 = arith.negf %17 : vector<8x128xf32>
    %19 = math.exp %18 : vector<8x128xf32>
    %cst_13 = arith.constant 1.000000e+00 : f32
    %20 = vector.broadcast %cst_13 : f32 to vector<8x128xf32>
    %21 = arith.addf %20, %19 : vector<8x128xf32>
    %22 = arith.divf %20, %21 : vector<8x128xf32>
    %23 = vector.extract_strided_slice %16 {offsets = [0, 128], sizes = [8, 128], strides = [1, 1]} : vector<8x512xf32> to vector<8x128xf32>
    %24 = arith.negf %23 : vector<8x128xf32>
    %25 = math.exp %24 : vector<8x128xf32>
    %cst_14 = arith.constant 1.000000e+00 : f32
    %26 = vector.broadcast %cst_14 : f32 to vector<8x128xf32>
    %27 = arith.addf %26, %25 : vector<8x128xf32>
    %28 = arith.divf %26, %27 : vector<8x128xf32>
    %29 = vector.extract_strided_slice %16 {offsets = [0, 256], sizes = [8, 128], strides = [1, 1]} : vector<8x512xf32> to vector<8x128xf32>
    %30 = math.tanh %29 : vector<8x128xf32>
    %31 = vector.extract_strided_slice %16 {offsets = [0, 384], sizes = [8, 128], strides = [1, 1]} : vector<8x512xf32> to vector<8x128xf32>
    %32 = arith.negf %31 : vector<8x128xf32>
    %33 = math.exp %32 : vector<8x128xf32>
    %cst_15 = arith.constant 1.000000e+00 : f32
    %34 = vector.broadcast %cst_15 : f32 to vector<8x128xf32>
    %35 = arith.addf %34, %33 : vector<8x128xf32>
    %36 = arith.divf %34, %35 : vector<8x128xf32>
    %37 = arith.mulf %28, %8 : vector<8x128xf32>
    %38 = arith.mulf %22, %30 : vector<8x128xf32>
    %39 = arith.addf %37, %38 : vector<8x128xf32>
    %40 = math.tanh %39 : vector<8x128xf32>
    %41 = arith.mulf %36, %40 : vector<8x128xf32>
    %c1_i32 = arith.constant 1 : i32
    %c8_i32_16 = arith.constant 8 : i32
    %42 = arith.muli %c1_i32, %c8_i32_16 : i32
    %43 = tpu.assume_multiple %42, 8 : i32
    %44 = arith.index_cast %43 : i32 to index
    %c0_17 = arith.constant 0 : index
    %45 = vector.load %arg8[%44, %c0_17] : memref<64x512xf32, #tpu.memory_space<vmem>>, vector<8x512xf32>
    %46 = arith.truncf %41 : vector<8x128xf32> to vector<8x128xbf16>
    %c0_18 = arith.constant 0 : index
    %c0_19 = arith.constant 0 : index
    %47 = vector.load %arg3[%c0_18, %c0_19] : memref<128x512xbf16, #tpu.memory_space<vmem>>, vector<128x512xbf16>
    %cst_20 = arith.constant dense<0.000000e+00> : vector<8x512xf32>
    %48 = tpu.matmul %46, %47, %cst_20 {dimension_numbers = #tpu.dot_dimension_numbers<[1], [0], [0], [1], [0, 0, 1, 1], [], []>} : vector<8x128xbf16>, vector<128x512xbf16>, vector<8x512xf32> -> vector<8x512xf32>
    %49 = arith.addf %45, %48 : vector<8x512xf32>
    %50 = vector.extract_strided_slice %49 {offsets = [0, 0], sizes = [8, 128], strides = [1, 1]} : vector<8x512xf32> to vector<8x128xf32>
    %51 = arith.negf %50 : vector<8x128xf32>
    %52 = math.exp %51 : vector<8x128xf32>
    %cst_21 = arith.constant 1.000000e+00 : f32
    %53 = vector.broadcast %cst_21 : f32 to vector<8x128xf32>
    %54 = arith.addf %53, %52 : vector<8x128xf32>
    %55 = arith.divf %53, %54 : vector<8x128xf32>
    %56 = vector.extract_strided_slice %49 {offsets = [0, 128], sizes = [8, 128], strides = [1, 1]} : vector<8x512xf32> to vector<8x128xf32>
    %57 = arith.negf %56 : vector<8x128xf32>
    %58 = math.exp %57 : vector<8x128xf32>
    %cst_22 = arith.constant 1.000000e+00 : f32
    %59 = vector.broadcast %cst_22 : f32 to vector<8x128xf32>
    %60 = arith.addf %59, %58 : vector<8x128xf32>
    %61 = arith.divf %59, %60 : vector<8x128xf32>
    %62 = vector.extract_strided_slice %49 {offsets = [0, 256], sizes = [8, 128], strides = [1, 1]} : vector<8x512xf32> to vector<8x128xf32>
    %63 = math.tanh %62 : vector<8x128xf32>
    %64 = vector.extract_strided_slice %49 {offsets = [0, 384], sizes = [8, 128], strides = [1, 1]} : vector<8x512xf32> to vector<8x128xf32>
    %65 = arith.negf %64 : vector<8x128xf32>
    %66 = math.exp %65 : vector<8x128xf32>
    %cst_23 = arith.constant 1.000000e+00 : f32
    %67 = vector.broadcast %cst_23 : f32 to vector<8x128xf32>
    %68 = arith.addf %67, %66 : vector<8x128xf32>
    %69 = arith.divf %67, %68 : vector<8x128xf32>
    %70 = arith.mulf %61, %39 : vector<8x128xf32>
    %71 = arith.mulf %55, %63 : vector<8x128xf32>
    %72 = arith.addf %70, %71 : vector<8x128xf32>
    %73 = math.tanh %72 : vector<8x128xf32>
    %74 = arith.mulf %69, %73 : vector<8x128xf32>
    %c2_i32 = arith.constant 2 : i32
    %c8_i32_24 = arith.constant 8 : i32
    %75 = arith.muli %c2_i32, %c8_i32_24 : i32
    %76 = tpu.assume_multiple %75, 8 : i32
    %77 = arith.index_cast %76 : i32 to index
    %c0_25 = arith.constant 0 : index
    %78 = vector.load %arg8[%77, %c0_25] : memref<64x512xf32, #tpu.memory_space<vmem>>, vector<8x512xf32>
    %79 = arith.truncf %74 : vector<8x128xf32> to vector<8x128xbf16>
    %c0_26 = arith.constant 0 : index
    %c0_27 = arith.constant 0 : index
    %80 = vector.load %arg3[%c0_26, %c0_27] : memref<128x512xbf16, #tpu.memory_space<vmem>>, vector<128x512xbf16>
    %cst_28 = arith.constant dense<0.000000e+00> : vector<8x512xf32>
    %81 = tpu.matmul %79, %80, %cst_28 {dimension_numbers = #tpu.dot_dimension_numbers<[1], [0], [0], [1], [0, 0, 1, 1], [], []>} : vector<8x128xbf16>, vector<128x512xbf16>, vector<8x512xf32> -> vector<8x512xf32>
    %82 = arith.addf %78, %81 : vector<8x512xf32>
    %83 = vector.extract_strided_slice %82 {offsets = [0, 0], sizes = [8, 128], strides = [1, 1]} : vector<8x512xf32> to vector<8x128xf32>
    %84 = arith.negf %83 : vector<8x128xf32>
    %85 = math.exp %84 : vector<8x128xf32>
    %cst_29 = arith.constant 1.000000e+00 : f32
    %86 = vector.broadcast %cst_29 : f32 to vector<8x128xf32>
    %87 = arith.addf %86, %85 : vector<8x128xf32>
    %88 = arith.divf %86, %87 : vector<8x128xf32>
    %89 = vector.extract_strided_slice %82 {offsets = [0, 128], sizes = [8, 128], strides = [1, 1]} : vector<8x512xf32> to vector<8x128xf32>
    %90 = arith.negf %89 : vector<8x128xf32>
    %91 = math.exp %90 : vector<8x128xf32>
    %cst_30 = arith.constant 1.000000e+00 : f32
    %92 = vector.broadcast %cst_30 : f32 to vector<8x128xf32>
    %93 = arith.addf %92, %91 : vector<8x128xf32>
    %94 = arith.divf %92, %93 : vector<8x128xf32>
    %95 = vector.extract_strided_slice %82 {offsets = [0, 256], sizes = [8, 128], strides = [1, 1]} : vector<8x512xf32> to vector<8x128xf32>
    %96 = math.tanh %95 : vector<8x128xf32>
    %97 = vector.extract_strided_slice %82 {offsets = [0, 384], sizes = [8, 128], strides = [1, 1]} : vector<8x512xf32> to vector<8x128xf32>
    %98 = arith.negf %97 : vector<8x128xf32>
    %99 = math.exp %98 : vector<8x128xf32>
    %cst_31 = arith.constant 1.000000e+00 : f32
    %100 = vector.broadcast %cst_31 : f32 to vector<8x128xf32>
    %101 = arith.addf %100, %99 : vector<8x128xf32>
    %102 = arith.divf %100, %101 : vector<8x128xf32>
    %103 = arith.mulf %94, %72 : vector<8x128xf32>
    %104 = arith.mulf %88, %96 : vector<8x128xf32>
    %105 = arith.addf %103, %104 : vector<8x128xf32>
    %106 = math.tanh %105 : vector<8x128xf32>
    %107 = arith.mulf %102, %106 : vector<8x128xf32>
    %c3_i32 = arith.constant 3 : i32
    %c8_i32_32 = arith.constant 8 : i32
    %108 = arith.muli %c3_i32, %c8_i32_32 : i32
    %109 = tpu.assume_multiple %108, 8 : i32
    %110 = arith.index_cast %109 : i32 to index
    %c0_33 = arith.constant 0 : index
    %111 = vector.load %arg8[%110, %c0_33] : memref<64x512xf32, #tpu.memory_space<vmem>>, vector<8x512xf32>
    %112 = arith.truncf %107 : vector<8x128xf32> to vector<8x128xbf16>
    %c0_34 = arith.constant 0 : index
    %c0_35 = arith.constant 0 : index
    %113 = vector.load %arg3[%c0_34, %c0_35] : memref<128x512xbf16, #tpu.memory_space<vmem>>, vector<128x512xbf16>
    %cst_36 = arith.constant dense<0.000000e+00> : vector<8x512xf32>
    %114 = tpu.matmul %112, %113, %cst_36 {dimension_numbers = #tpu.dot_dimension_numbers<[1], [0], [0], [1], [0, 0, 1, 1], [], []>} : vector<8x128xbf16>, vector<128x512xbf16>, vector<8x512xf32> -> vector<8x512xf32>
    %115 = arith.addf %111, %114 : vector<8x512xf32>
    %116 = vector.extract_strided_slice %115 {offsets = [0, 0], sizes = [8, 128], strides = [1, 1]} : vector<8x512xf32> to vector<8x128xf32>
    %117 = arith.negf %116 : vector<8x128xf32>
    %118 = math.exp %117 : vector<8x128xf32>
    %cst_37 = arith.constant 1.000000e+00 : f32
    %119 = vector.broadcast %cst_37 : f32 to vector<8x128xf32>
    %120 = arith.addf %119, %118 : vector<8x128xf32>
    %121 = arith.divf %119, %120 : vector<8x128xf32>
    %122 = vector.extract_strided_slice %115 {offsets = [0, 128], sizes = [8, 128], strides = [1, 1]} : vector<8x512xf32> to vector<8x128xf32>
    %123 = arith.negf %122 : vector<8x128xf32>
    %124 = math.exp %123 : vector<8x128xf32>
    %cst_38 = arith.constant 1.000000e+00 : f32
    %125 = vector.broadcast %cst_38 : f32 to vector<8x128xf32>
    %126 = arith.addf %125, %124 : vector<8x128xf32>
    %127 = arith.divf %125, %126 : vector<8x128xf32>
    %128 = vector.extract_strided_slice %115 {offsets = [0, 256], sizes = [8, 128], strides = [1, 1]} : vector<8x512xf32> to vector<8x128xf32>
    %129 = math.tanh %128 : vector<8x128xf32>
    %130 = vector.extract_strided_slice %115 {offsets = [0, 384], sizes = [8, 128], strides = [1, 1]} : vector<8x512xf32> to vector<8x128xf32>
    %131 = arith.negf %130 : vector<8x128xf32>
    %132 = math.exp %131 : vector<8x128xf32>
    %cst_39 = arith.constant 1.000000e+00 : f32
    %133 = vector.broadcast %cst_39 : f32 to vector<8x128xf32>
    %134 = arith.addf %133, %132 : vector<8x128xf32>
    %135 = arith.divf %133, %134 : vector<8x128xf32>
    %136 = arith.mulf %127, %105 : vector<8x128xf32>
    %137 = arith.mulf %121, %129 : vector<8x128xf32>
    %138 = arith.addf %136, %137 : vector<8x128xf32>
    %139 = math.tanh %138 : vector<8x128xf32>
    %140 = arith.mulf %135, %139 : vector<8x128xf32>
    %c4_i32 = arith.constant 4 : i32
    %c8_i32_40 = arith.constant 8 : i32
    %141 = arith.muli %c4_i32, %c8_i32_40 : i32
    %142 = tpu.assume_multiple %141, 8 : i32
    %143 = arith.index_cast %142 : i32 to index
    %c0_41 = arith.constant 0 : index
    %144 = vector.load %arg8[%143, %c0_41] : memref<64x512xf32, #tpu.memory_space<vmem>>, vector<8x512xf32>
    %145 = arith.truncf %140 : vector<8x128xf32> to vector<8x128xbf16>
    %c0_42 = arith.constant 0 : index
    %c0_43 = arith.constant 0 : index
    %146 = vector.load %arg3[%c0_42, %c0_43] : memref<128x512xbf16, #tpu.memory_space<vmem>>, vector<128x512xbf16>
    %cst_44 = arith.constant dense<0.000000e+00> : vector<8x512xf32>
    %147 = tpu.matmul %145, %146, %cst_44 {dimension_numbers = #tpu.dot_dimension_numbers<[1], [0], [0], [1], [0, 0, 1, 1], [], []>} : vector<8x128xbf16>, vector<128x512xbf16>, vector<8x512xf32> -> vector<8x512xf32>
    %148 = arith.addf %144, %147 : vector<8x512xf32>
    %149 = vector.extract_strided_slice %148 {offsets = [0, 0], sizes = [8, 128], strides = [1, 1]} : vector<8x512xf32> to vector<8x128xf32>
    %150 = arith.negf %149 : vector<8x128xf32>
    %151 = math.exp %150 : vector<8x128xf32>
    %cst_45 = arith.constant 1.000000e+00 : f32
    %152 = vector.broadcast %cst_45 : f32 to vector<8x128xf32>
    %153 = arith.addf %152, %151 : vector<8x128xf32>
    %154 = arith.divf %152, %153 : vector<8x128xf32>
    %155 = vector.extract_strided_slice %148 {offsets = [0, 128], sizes = [8, 128], strides = [1, 1]} : vector<8x512xf32> to vector<8x128xf32>
    %156 = arith.negf %155 : vector<8x128xf32>
    %157 = math.exp %156 : vector<8x128xf32>
    %cst_46 = arith.constant 1.000000e+00 : f32
    %158 = vector.broadcast %cst_46 : f32 to vector<8x128xf32>
    %159 = arith.addf %158, %157 : vector<8x128xf32>
    %160 = arith.divf %158, %159 : vector<8x128xf32>
    %161 = vector.extract_strided_slice %148 {offsets = [0, 256], sizes = [8, 128], strides = [1, 1]} : vector<8x512xf32> to vector<8x128xf32>
    %162 = math.tanh %161 : vector<8x128xf32>
    %163 = vector.extract_strided_slice %148 {offsets = [0, 384], sizes = [8, 128], strides = [1, 1]} : vector<8x512xf32> to vector<8x128xf32>
    %164 = arith.negf %163 : vector<8x128xf32>
    %165 = math.exp %164 : vector<8x128xf32>
    %cst_47 = arith.constant 1.000000e+00 : f32
    %166 = vector.broadcast %cst_47 : f32 to vector<8x128xf32>
    %167 = arith.addf %166, %165 : vector<8x128xf32>
    %168 = arith.divf %166, %167 : vector<8x128xf32>
    %169 = arith.mulf %160, %138 : vector<8x128xf32>
    %170 = arith.mulf %154, %162 : vector<8x128xf32>
    %171 = arith.addf %169, %170 : vector<8x128xf32>
    %172 = math.tanh %171 : vector<8x128xf32>
    %173 = arith.mulf %168, %172 : vector<8x128xf32>
    %c5_i32 = arith.constant 5 : i32
    %c8_i32_48 = arith.constant 8 : i32
    %174 = arith.muli %c5_i32, %c8_i32_48 : i32
    %175 = tpu.assume_multiple %174, 8 : i32
    %176 = arith.index_cast %175 : i32 to index
    %c0_49 = arith.constant 0 : index
    %177 = vector.load %arg8[%176, %c0_49] : memref<64x512xf32, #tpu.memory_space<vmem>>, vector<8x512xf32>
    %178 = arith.truncf %173 : vector<8x128xf32> to vector<8x128xbf16>
    %c0_50 = arith.constant 0 : index
    %c0_51 = arith.constant 0 : index
    %179 = vector.load %arg3[%c0_50, %c0_51] : memref<128x512xbf16, #tpu.memory_space<vmem>>, vector<128x512xbf16>
    %cst_52 = arith.constant dense<0.000000e+00> : vector<8x512xf32>
    %180 = tpu.matmul %178, %179, %cst_52 {dimension_numbers = #tpu.dot_dimension_numbers<[1], [0], [0], [1], [0, 0, 1, 1], [], []>} : vector<8x128xbf16>, vector<128x512xbf16>, vector<8x512xf32> -> vector<8x512xf32>
    %181 = arith.addf %177, %180 : vector<8x512xf32>
    %182 = vector.extract_strided_slice %181 {offsets = [0, 0], sizes = [8, 128], strides = [1, 1]} : vector<8x512xf32> to vector<8x128xf32>
    %183 = arith.negf %182 : vector<8x128xf32>
    %184 = math.exp %183 : vector<8x128xf32>
    %cst_53 = arith.constant 1.000000e+00 : f32
    %185 = vector.broadcast %cst_53 : f32 to vector<8x128xf32>
    %186 = arith.addf %185, %184 : vector<8x128xf32>
    %187 = arith.divf %185, %186 : vector<8x128xf32>
    %188 = vector.extract_strided_slice %181 {offsets = [0, 128], sizes = [8, 128], strides = [1, 1]} : vector<8x512xf32> to vector<8x128xf32>
    %189 = arith.negf %188 : vector<8x128xf32>
    %190 = math.exp %189 : vector<8x128xf32>
    %cst_54 = arith.constant 1.000000e+00 : f32
    %191 = vector.broadcast %cst_54 : f32 to vector<8x128xf32>
    %192 = arith.addf %191, %190 : vector<8x128xf32>
    %193 = arith.divf %191, %192 : vector<8x128xf32>
    %194 = vector.extract_strided_slice %181 {offsets = [0, 256], sizes = [8, 128], strides = [1, 1]} : vector<8x512xf32> to vector<8x128xf32>
    %195 = math.tanh %194 : vector<8x128xf32>
    %196 = vector.extract_strided_slice %181 {offsets = [0, 384], sizes = [8, 128], strides = [1, 1]} : vector<8x512xf32> to vector<8x128xf32>
    %197 = arith.negf %196 : vector<8x128xf32>
    %198 = math.exp %197 : vector<8x128xf32>
    %cst_55 = arith.constant 1.000000e+00 : f32
    %199 = vector.broadcast %cst_55 : f32 to vector<8x128xf32>
    %200 = arith.addf %199, %198 : vector<8x128xf32>
    %201 = arith.divf %199, %200 : vector<8x128xf32>
    %202 = arith.mulf %193, %171 : vector<8x128xf32>
    %203 = arith.mulf %187, %195 : vector<8x128xf32>
    %204 = arith.addf %202, %203 : vector<8x128xf32>
    %205 = math.tanh %204 : vector<8x128xf32>
    %206 = arith.mulf %201, %205 : vector<8x128xf32>
    %c6_i32 = arith.constant 6 : i32
    %c8_i32_56 = arith.constant 8 : i32
    %207 = arith.muli %c6_i32, %c8_i32_56 : i32
    %208 = tpu.assume_multiple %207, 8 : i32
    %209 = arith.index_cast %208 : i32 to index
    %c0_57 = arith.constant 0 : index
    %210 = vector.load %arg8[%209, %c0_57] : memref<64x512xf32, #tpu.memory_space<vmem>>, vector<8x512xf32>
    %211 = arith.truncf %206 : vector<8x128xf32> to vector<8x128xbf16>
    %c0_58 = arith.constant 0 : index
    %c0_59 = arith.constant 0 : index
    %212 = vector.load %arg3[%c0_58, %c0_59] : memref<128x512xbf16, #tpu.memory_space<vmem>>, vector<128x512xbf16>
    %cst_60 = arith.constant dense<0.000000e+00> : vector<8x512xf32>
    %213 = tpu.matmul %211, %212, %cst_60 {dimension_numbers = #tpu.dot_dimension_numbers<[1], [0], [0], [1], [0, 0, 1, 1], [], []>} : vector<8x128xbf16>, vector<128x512xbf16>, vector<8x512xf32> -> vector<8x512xf32>
    %214 = arith.addf %210, %213 : vector<8x512xf32>
    %215 = vector.extract_strided_slice %214 {offsets = [0, 0], sizes = [8, 128], strides = [1, 1]} : vector<8x512xf32> to vector<8x128xf32>
    %216 = arith.negf %215 : vector<8x128xf32>
    %217 = math.exp %216 : vector<8x128xf32>
    %cst_61 = arith.constant 1.000000e+00 : f32
    %218 = vector.broadcast %cst_61 : f32 to vector<8x128xf32>
    %219 = arith.addf %218, %217 : vector<8x128xf32>
    %220 = arith.divf %218, %219 : vector<8x128xf32>
    %221 = vector.extract_strided_slice %214 {offsets = [0, 128], sizes = [8, 128], strides = [1, 1]} : vector<8x512xf32> to vector<8x128xf32>
    %222 = arith.negf %221 : vector<8x128xf32>
    %223 = math.exp %222 : vector<8x128xf32>
    %cst_62 = arith.constant 1.000000e+00 : f32
    %224 = vector.broadcast %cst_62 : f32 to vector<8x128xf32>
    %225 = arith.addf %224, %223 : vector<8x128xf32>
    %226 = arith.divf %224, %225 : vector<8x128xf32>
    %227 = vector.extract_strided_slice %214 {offsets = [0, 256], sizes = [8, 128], strides = [1, 1]} : vector<8x512xf32> to vector<8x128xf32>
    %228 = math.tanh %227 : vector<8x128xf32>
    %229 = vector.extract_strided_slice %214 {offsets = [0, 384], sizes = [8, 128], strides = [1, 1]} : vector<8x512xf32> to vector<8x128xf32>
    %230 = arith.negf %229 : vector<8x128xf32>
    %231 = math.exp %230 : vector<8x128xf32>
    %cst_63 = arith.constant 1.000000e+00 : f32
    %232 = vector.broadcast %cst_63 : f32 to vector<8x128xf32>
    %233 = arith.addf %232, %231 : vector<8x128xf32>
    %234 = arith.divf %232, %233 : vector<8x128xf32>
    %235 = arith.mulf %226, %204 : vector<8x128xf32>
    %236 = arith.mulf %220, %228 : vector<8x128xf32>
    %237 = arith.addf %235, %236 : vector<8x128xf32>
    %238 = math.tanh %237 : vector<8x128xf32>
    %239 = arith.mulf %234, %238 : vector<8x128xf32>
    %c7_i32 = arith.constant 7 : i32
    %c8_i32_64 = arith.constant 8 : i32
    %240 = arith.muli %c7_i32, %c8_i32_64 : i32
    %241 = tpu.assume_multiple %240, 8 : i32
    %242 = arith.index_cast %241 : i32 to index
    %c0_65 = arith.constant 0 : index
    %243 = vector.load %arg8[%242, %c0_65] : memref<64x512xf32, #tpu.memory_space<vmem>>, vector<8x512xf32>
    %244 = arith.truncf %239 : vector<8x128xf32> to vector<8x128xbf16>
    %c0_66 = arith.constant 0 : index
    %c0_67 = arith.constant 0 : index
    %245 = vector.load %arg3[%c0_66, %c0_67] : memref<128x512xbf16, #tpu.memory_space<vmem>>, vector<128x512xbf16>
    %cst_68 = arith.constant dense<0.000000e+00> : vector<8x512xf32>
    %246 = tpu.matmul %244, %245, %cst_68 {dimension_numbers = #tpu.dot_dimension_numbers<[1], [0], [0], [1], [0, 0, 1, 1], [], []>} : vector<8x128xbf16>, vector<128x512xbf16>, vector<8x512xf32> -> vector<8x512xf32>
    %247 = arith.addf %243, %246 : vector<8x512xf32>
    %248 = vector.extract_strided_slice %247 {offsets = [0, 0], sizes = [8, 128], strides = [1, 1]} : vector<8x512xf32> to vector<8x128xf32>
    %249 = arith.negf %248 : vector<8x128xf32>
    %250 = math.exp %249 : vector<8x128xf32>
    %cst_69 = arith.constant 1.000000e+00 : f32
    %251 = vector.broadcast %cst_69 : f32 to vector<8x128xf32>
    %252 = arith.addf %251, %250 : vector<8x128xf32>
    %253 = arith.divf %251, %252 : vector<8x128xf32>
    %254 = vector.extract_strided_slice %247 {offsets = [0, 128], sizes = [8, 128], strides = [1, 1]} : vector<8x512xf32> to vector<8x128xf32>
    %255 = arith.negf %254 : vector<8x128xf32>
    %256 = math.exp %255 : vector<8x128xf32>
    %cst_70 = arith.constant 1.000000e+00 : f32
    %257 = vector.broadcast %cst_70 : f32 to vector<8x128xf32>
    %258 = arith.addf %257, %256 : vector<8x128xf32>
    %259 = arith.divf %257, %258 : vector<8x128xf32>
    %260 = vector.extract_strided_slice %247 {offsets = [0, 256], sizes = [8, 128], strides = [1, 1]} : vector<8x512xf32> to vector<8x128xf32>
    %261 = math.tanh %260 : vector<8x128xf32>
    %262 = vector.extract_strided_slice %247 {offsets = [0, 384], sizes = [8, 128], strides = [1, 1]} : vector<8x512xf32> to vector<8x128xf32>
    %263 = arith.negf %262 : vector<8x128xf32>
    %264 = math.exp %263 : vector<8x128xf32>
    %cst_71 = arith.constant 1.000000e+00 : f32
    %265 = vector.broadcast %cst_71 : f32 to vector<8x128xf32>
    %266 = arith.addf %265, %264 : vector<8x128xf32>
    %267 = arith.divf %265, %266 : vector<8x128xf32>
    %268 = arith.mulf %259, %237 : vector<8x128xf32>
    %269 = arith.mulf %253, %261 : vector<8x128xf32>
    %270 = arith.addf %268, %269 : vector<8x128xf32>
    %271 = math.tanh %270 : vector<8x128xf32>
    %272 = arith.mulf %267, %271 : vector<8x128xf32>
    %c8_i32_72 = arith.constant 8 : i32
    %273 = arith.truncf %272 : vector<8x128xf32> to vector<8x128xbf16>
    %c0_73 = arith.constant 0 : index
    %c0_74 = arith.constant 0 : index
    %274 = vector.load %arg5[%c0_73, %c0_74] : memref<128x128xbf16, #tpu.memory_space<vmem>>, vector<128x128xbf16>
    %cst_75 = arith.constant dense<0.000000e+00> : vector<8x128xf32>
    %275 = tpu.matmul %273, %274, %cst_75 {dimension_numbers = #tpu.dot_dimension_numbers<[1], [0], [0], [1], [0, 0, 1, 1], [], []>} : vector<8x128xbf16>, vector<128x128xbf16>, vector<8x128xf32> -> vector<8x128xf32>
    %c0_76 = arith.constant 0 : index
    %c0_77 = arith.constant 0 : index
    %276 = vector.load %arg6[%c0_76, %c0_77] : memref<1x128xf32, #tpu.memory_space<vmem>>, vector<1x128xf32>
    %277 = vector.broadcast %276 : vector<1x128xf32> to vector<8x128xf32>
    %278 = arith.addf %275, %277 : vector<8x128xf32>
    %c0_78 = arith.constant 0 : index
    %c0_79 = arith.constant 0 : index
    %279 = vector.load %arg7[%c0_78, %c0_79] : memref<8x128xf32, #tpu.memory_space<vmem>>, vector<8x128xf32>
    tpu.vector_store %arg7[%c0_78, %c0_79], %278 {strides = array<i32>} : memref<8x128xf32, #tpu.memory_space<vmem>>, vector<8x128xf32>,
    return
  }
  func.func @transform_0(%arg0: i32) -> (i32, i32) {
    %c0_i32 = arith.constant 0 : i32
    %c0_i32_0 = arith.constant 0 : i32
    %c0_i32_1 = arith.constant 0 : i32
    return %c0_i32, %c0_i32_0 : i32, i32
  }
  func.func @transform_1(%arg0: i32) -> (i32, i32) {
    %c0_i32 = arith.constant 0 : i32
    %c0_i32_0 = arith.constant 0 : i32
    %c0_i32_1 = arith.constant 0 : i32
    return %c0_i32, %c0_i32_0 : i32, i32
  }
  func.func @transform_2(%arg0: i32) -> (i32, i32) {
    %c0_i32 = arith.constant 0 : i32
    %c0_i32_0 = arith.constant 0 : i32
    %c0_i32_1 = arith.constant 0 : i32
    return %c0_i32, %c0_i32_0 : i32, i32
  }
  func.func @transform_3(%arg0: i32) -> (i32, i32) {
    %c0_i32 = arith.constant 0 : i32
    %c0_i32_0 = arith.constant 0 : i32
    %c0_i32_1 = arith.constant 0 : i32
    return %c0_i32, %c0_i32_0 : i32, i32
  }
  func.func @transform_4(%arg0: i32) -> (i32, i32) {
    %c0_i32 = arith.constant 0 : i32
    %c0_i32_0 = arith.constant 0 : i32
    %c0_i32_1 = arith.constant 0 : i32
    return %c0_i32, %c0_i32_0 : i32, i32
  }
  func.func @transform_5(%arg0: i32) -> (i32, i32) {
    %c0_i32 = arith.constant 0 : i32
    %c0_i32_0 = arith.constant 0 : i32
    %c0_i32_1 = arith.constant 0 : i32
    return %c0_i32, %c0_i32_0 : i32, i32
  }
  func.func @transform_6(%arg0: i32) -> (i32, i32) {
    %c0_i32 = arith.constant 0 : i32
    %c0_i32_0 = arith.constant 0 : i32
    %c0_i32_1 = arith.constant 0 : i32
    return %c0_i32, %c0_i32_0 : i32, i32
  }
}

</mosaic_0001>

<llo_original>
// kernel: tpu_custom_call.1
$region0: #{tpu_custom_call.1}
  #allocation0 [shape = 'u32[]', space=smem, size = 0x4, offset = 0x4, fixed_abs, tag = 'smem constant byte address 0x4 - core index']
  #allocation1 [shape = 'u32[72,128]{1,0:T(1,128)}', space=vmem, size = 0x9000, scoped, tag = 'internal scratch']
  #allocation2 [shape = 'f32[64,512]{1,0:T(8,128)}', space=vmem, size = 0x20000, scoped, tag = 'scratch operand']
  %s0 = inlined_call_operand.vmem [shape: bf16[64,28], index: 0, kind: input, shape index: {}]
  %s1 = inlined_call_operand.hbm [shape: bf16[28,512], index: 1, kind: input, shape index: {}]
  %s2 = inlined_call_operand.hbm [shape: bf16[128,512], index: 2, kind: input, shape index: {}]
  %s3 = inlined_call_operand.vmem [shape: f32[1,512], index: 3, kind: input, shape index: {}]
  %s4 = inlined_call_operand.hbm [shape: bf16[128,128], index: 4, kind: input, shape index: {}]
  %s5 = inlined_call_operand.vmem [shape: f32[1,128], index: 5, kind: input, shape index: {}]
  %s6 = inlined_call_operand.hbm [shape: f32[8,128], index: 6, kind: output, shape index: {}]
  %s7 = sld [smem:[#allocation0]]
  $region46: #{tpu_custom_call.1} parent=0
    _
  %s9 = ssub.s32 1, %s7
  %s10 = scalar_select 0, %s9, %s7
  $region1: #{tpu_custom_call.1} parent=0
    #allocation3 [shape = 'u8[32768]{0}', space=vmem, size = 0x8000, scoped, tag = 'input window, operand 1, single buffered']
    #allocation4 [shape = 's32[1]{0}', space=sflag, size = 0x4, scoped, tag = 'scoped memory for tpu_custom_call.1']
    #allocation5 [shape = 's32[1]{0}', space=sflag, size = 0x4, scoped, tag = 'scoped memory for tpu_custom_call.1']
    #allocation6 [shape = 'u8[131072]{0}', space=vmem, size = 0x20000, scoped, tag = 'input window, operand 2, single buffered']
    #allocation7 [shape = 's32[1]{0}', space=sflag, size = 0x4, scoped, tag = 'scoped memory for tpu_custom_call.1']
    #allocation8 [shape = 'u8[32768]{0}', space=vmem, size = 0x8000, scoped, tag = 'input window, operand 4, single buffered']
    #allocation9 [shape = 'u8[4096]{0}', space=vmem, size = 0x1000, scoped, tag = 'output window, operand 0, single buffered']
    %11 = vsyncpa [#allocation4], 0
    %12 = vsyncpa [#allocation7], 0
    %13 = vsyncpa [#allocation5], 0
    // Predicated region
    $region2: #{tpu_custom_call.1} parent=1 // pred_check
      _
    $region3: #{tpu_custom_call.1} parent=1 // pred_check_branch
      %15 = sbr.rel (0) target = $region5
    $region4: #{tpu_custom_call.1} parent=1 // pred_region
      _
    $region5: #{tpu_custom_call.1} parent=1 // pred_fallthru
      _
    // Predicated region
    $region6: #{tpu_custom_call.1} parent=1 // pred_check
      _
    $region7: #{tpu_custom_call.1} parent=1 // pred_check_branch
      %17 = sbr.rel (0) target = $region9
    $region8: #{tpu_custom_call.1} parent=1 // pred_region
      %19 = vsyncadd [#allocation4], 0
      %s20 = sshll.u32 %s1, 4
      %s21 = int_to_ptr.hbm [resolvable:$true] %s20
      %s22 = sshll.u32 [#allocation3], 4
      %s23 = int_to_ptr.vmem [resolvable:$true] %s22
      %28 = dma.hbm_to_vmem [thread:$0]  %s21, 1024, %s23, [#allocation4], 256, 256, 16
    $region9: #{tpu_custom_call.1} parent=1 // pred_fallthru
      _
    // Predicated region
    $region10: #{tpu_custom_call.1} parent=1 // pred_check
      _
    $region11: #{tpu_custom_call.1} parent=1 // pred_check_branch
      %30 = sbr.rel (0) target = $region13
    $region12: #{tpu_custom_call.1} parent=1 // pred_region
      %32 = vsyncadd [#allocation7], 0
      %s33 = sshll.u32 %s2, 4
      %s34 = int_to_ptr.hbm [resolvable:$true] %s33
      %s35 = sshll.u32 [#allocation6], 4
      %s36 = int_to_ptr.vmem [resolvable:$true] %s35
      %41 = dma.hbm_to_vmem [thread:$0]  %s34, 4096, %s36, [#allocation7], 256, 256, 16
    $region13: #{tpu_custom_call.1} parent=1 // pred_fallthru
      _
    // Predicated region
    $region14: #{tpu_custom_call.1} parent=1 // pred_check
      _
    $region15: #{tpu_custom_call.1} parent=1 // pred_check_branch
      %43 = sbr.rel (0) target = $region17
    $region16: #{tpu_custom_call.1} parent=1 // pred_region
      _
    $region17: #{tpu_custom_call.1} parent=1 // pred_fallthru
      _
    // Predicated region
    $region18: #{tpu_custom_call.1} parent=1 // pred_check
      _
    $region19: #{tpu_custom_call.1} parent=1 // pred_check_branch
      %45 = sbr.rel (0) target = $region21
    $region20: #{tpu_custom_call.1} parent=1 // pred_region
      %47 = vsyncadd [#allocation7], 0
      %s48 = sshll.u32 %s4, 4
      %s49 = int_to_ptr.hbm [resolvable:$true] %s48
      %s50 = sshll.u32 [#allocation8], 4
      %s51 = int_to_ptr.vmem [resolvable:$true] %s50
      %56 = dma.hbm_to_vmem [thread:$0]  %s49, 1024, %s51, [#allocation7], 64, 64, 4
    $region21: #{tpu_custom_call.1} parent=1 // pred_fallthru
      _
    // Predicated region
    $region22: #{tpu_custom_call.1} parent=1 // pred_check
      _
    $region23: #{tpu_custom_call.1} parent=1 // pred_check_branch
      %58 = sbr.rel (0) target = $region25
    $region24: #{tpu_custom_call.1} parent=1 // pred_region
      _
    $region25: #{tpu_custom_call.1} parent=1 // pred_fallthru
      _
    // Predicated region
    $region26: #{tpu_custom_call.1} parent=1 // pred_check
      _
    $region27: #{tpu_custom_call.1} parent=1 // pred_check_branch
      %60 = sbr.rel (0) target = $region29
    $region28: #{tpu_custom_call.1} parent=1 // pred_region
      %62 = dma.done [#allocation4], 1024
    $region29: #{tpu_custom_call.1} parent=1 // pred_fallthru
      _
    // Predicated region
    $region30: #{tpu_custom_call.1} parent=1 // pred_check
      _
    $region31: #{tpu_custom_call.1} parent=1 // pred_check_branch
      %64 = sbr.rel (0) target = $region33
    $region32: #{tpu_custom_call.1} parent=1 // pred_region
      %66 = dma.done [#allocation7], 4096
    $region33: #{tpu_custom_call.1} parent=1 // pred_fallthru
      _
    // Predicated region
    $region34: #{tpu_custom_call.1} parent=1 // pred_check
      _
    $region35: #{tpu_custom_call.1} parent=1 // pred_check_branch
      %68 = sbr.rel (0) target = $region37
    $region36: #{tpu_custom_call.1} parent=1 // pred_region
      %70 = dma.done [#allocation7], 1024
    $region37: #{tpu_custom_call.1} parent=1 // pred_fallthru
      _
    %v72 = vld [vmem:[%s0] sm:$0xf]
    %v73 = vld [vmem:[%s0 + $0x4] sm:$0xf]
    %v74 = vld [vmem:[%s0 + $0x8] sm:$0xf]
    %v75 = vld [vmem:[%s0 + $0xc] sm:$0xf]
    %v76 = vld [vmem:[%s0 + $0x10] sm:$0xf]
    %v77 = vld [vmem:[%s0 + $0x14] sm:$0xf]
    %v78 = vld [vmem:[%s0 + $0x18] sm:$0xf]
    %v79 = vld [vmem:[%s0 + $0x1c] sm:$0xf]
    %v80 = vld [vmem:[#allocation3] sm:$0xff]
    %v81 = vld [vmem:[#allocation3 + $0x8] sm:$0xff]
    %v82 = vld [vmem:[#allocation3 + $0x10] sm:$0xff]
    %v83 = vld [vmem:[#allocation3 + $0x18] sm:$0xff]
    %v84 = vld [vmem:[#allocation3 + $0x20] sm:$0xff]
    %v85 = vld [vmem:[#allocation3 + $0x28] sm:$0xff]
    %v86 = vld [vmem:[#allocation3 + $0x30] sm:$0x33]
    %v87 = vld [vmem:[#allocation3 + $0x38] sm:$0x33]
    %v88 = vld [vmem:[%s3] sm:$0xf]
    %v90 = vperm.slane %v88, 0
    %v91 = vperm.slane %v88, 1
    %v92 = vperm.slane %v88, 2
    %v93 = vperm.slane %v88, 3
    %v106 = vunpack.c.l.b16 %v72
    %v107 = vunpack.c.l.b16 %v73
    %v108 = vunpack.c.l.b16 %v74
    %v109 = vunpack.c.l.b16 %v75
    %v110 = vunpack.c.l.b16 %v76
    %v111 = vunpack.c.l.b16 %v77
    %v112 = vunpack.c.l.b16 %v78
    %v113 = vunpack.c.l.b16 %v79
    %v114 = vpack.c.b16 %v107, %v106
    %v115 = vpack.c.b16 %v109, %v108
    %v116 = vpack.c.b16 %v111, %v110
    %v117 = vpack.c.b16 %v113, %v112
    %v126 = vunpack.c.l.b16 %v80
    %v127 = vunpack.c.h.b16 %v80
    %v128 = vunpack.c.l.b16 %v81
    %v129 = vunpack.c.h.b16 %v81
    %v130 = vunpack.c.l.b16 %v82
    %v131 = vunpack.c.h.b16 %v82
    %v132 = vunpack.c.l.b16 %v83
    %v133 = vunpack.c.h.b16 %v83
    %v134 = vunpack.c.l.b16 %v84
    %v135 = vunpack.c.h.b16 %v84
    %v136 = vunpack.c.l.b16 %v85
    %v137 = vunpack.c.h.b16 %v85
    %v138 = vunpack.c.l.b16 %v86
    %v139 = vunpack.c.h.b16 %v86
    %v140 = vunpack.c.l.b16 %v87
    %v141 = vunpack.c.h.b16 %v87
    %v142 = vpack.c.b16 %v130, %v126
    %v143 = vpack.c.b16 %v131, %v127
    %v144 = vpack.c.b16 %v132, %v128
    %v145 = vpack.c.b16 %v133, %v129
    %v146 = vpack.c.b16 %v138, %v134
    %v147 = vpack.c.b16 %v139, %v135
    %v148 = vpack.c.b16 %v140, %v136
    %v149 = vpack.c.b16 %v141, %v137
    %vm154 = vcmask 228352
    %v156 = vsel %vm154, %v114, 0
    %v159 = vsel %vm154, %v115, 0
    %v162 = vsel %vm154, %v116, 0
    %v165 = vsel %vm154, %v117, 0
    %vm167 = vcmask 1045504
    %v169 = vsel %vm167, %v146, 0
    %v172 = vsel %vm167, %v147, 0
    %v175 = vsel %vm167, %v148, 0
    %v178 = vsel %vm167, %v149, 0
    %180 = vmatpush.bf16.msra.mxu0 0
    %181 = vmatpush.bf16.msra.mxu0 0
    %182 = vmatpush.bf16.msra.mxu0 0
    %183 = vmatpush.bf16.msra.mxu0 0
    %184 = vmatpush.bf16.msra.mxu0 0
    %185 = vmatpush.bf16.msra.mxu0 0
    %186 = vmatpush.bf16.msra.mxu0 %v169
    %187 = vmatpush.bf16.msra.mxu0 %v142
    %188 = vmatmul.bf16.gmra.mxu0 %v156
    %v189 = vpop.f32.mrf.mxu0
    %v190 = vadd.f32 %v90, %v189
    %v191 = vpop.f32.mrf.mxu0
    %v192 = vadd.f32 %v90, %v191
    %193 = vmatmul.bf16.gmra.mxu0 %v159
    %v194 = vpop.f32.mrf.mxu0
    %v195 = vadd.f32 %v90, %v194
    %v196 = vpop.f32.mrf.mxu0
    %v197 = vadd.f32 %v90, %v196
    %198 = vmatmul.bf16.gmra.mxu0 %v162
    %v199 = vpop.f32.mrf.mxu0
    %v200 = vadd.f32 %v90, %v199
    %v201 = vpop.f32.mrf.mxu0
    %v202 = vadd.f32 %v90, %v201
    %203 = vmatmul.bf16.gmra.mxu0 %v165
    %v204 = vpop.f32.mrf.mxu0
    %v205 = vadd.f32 %v90, %v204
    %v206 = vpop.f32.mrf.mxu0
    %v207 = vadd.f32 %v90, %v206
    %208 = vdwg.mxu0
    %209 = vmatpush.bf16.msra.mxu0 0
    %210 = vmatpush.bf16.msra.mxu0 0
    %211 = vmatpush.bf16.msra.mxu0 0
    %212 = vmatpush.bf16.msra.mxu0 0
    %213 = vmatpush.bf16.msra.mxu0 0
    %214 = vmatpush.bf16.msra.mxu0 0
    %215 = vmatpush.bf16.msra.mxu0 %v172
    %216 = vmatpush.bf16.msra.mxu0 %v143
    %217 = vmatmul.bf16.gmra.mxu0 %v156
    %v218 = vpop.f32.mrf.mxu0
    %v219 = vadd.f32 %v91, %v218
    %v220 = vpop.f32.mrf.mxu0
    %v221 = vadd.f32 %v91, %v220
    %222 = vmatmul.bf16.gmra.mxu0 %v159
    %v223 = vpop.f32.mrf.mxu0
    %v224 = vadd.f32 %v91, %v223
    %v225 = vpop.f32.mrf.mxu0
    %v226 = vadd.f32 %v91, %v225
    %227 = vmatmul.bf16.gmra.mxu0 %v162
    %v228 = vpop.f32.mrf.mxu0
    %v229 = vadd.f32 %v91, %v228
    %v230 = vpop.f32.mrf.mxu0
    %v231 = vadd.f32 %v91, %v230
    %232 = vmatmul.bf16.gmra.mxu0 %v165
    %v233 = vpop.f32.mrf.mxu0
    %v234 = vadd.f32 %v91, %v233
    %v235 = vpop.f32.mrf.mxu0
    %v236 = vadd.f32 %v91, %v235
    %237 = vdwg.mxu0
    %238 = vmatpush.bf16.msra.mxu0 0
    %239 = vmatpush.bf16.msra.mxu0 0
    %240 = vmatpush.bf16.msra.mxu0 0
    %241 = vmatpush.bf16.msra.mxu0 0
    %242 = vmatpush.bf16.msra.mxu0 0
    %243 = vmatpush.bf16.msra.mxu0 0
    %244 = vmatpush.bf16.msra.mxu0 %v175
    %245 = vmatpush.bf16.msra.mxu0 %v144
    %246 = vmatmul.bf16.gmra.mxu0 %v156
    %v247 = vpop.f32.mrf.mxu0
    %v248 = vadd.f32 %v92, %v247
    %v249 = vpop.f32.mrf.mxu0
    %v250 = vadd.f32 %v92, %v249
    %251 = vmatmul.bf16.gmra.mxu0 %v159
    %v252 = vpop.f32.mrf.mxu0
    %v253 = vadd.f32 %v92, %v252
    %v254 = vpop.f32.mrf.mxu0
    %v255 = vadd.f32 %v92, %v254
    %256 = vmatmul.bf16.gmra.mxu0 %v162
    %v257 = vpop.f32.mrf.mxu0
    %v258 = vadd.f32 %v92, %v257
    %v259 = vpop.f32.mrf.mxu0
    %v260 = vadd.f32 %v92, %v259
    %261 = vmatmul.bf16.gmra.mxu0 %v165
    %v262 = vpop.f32.mrf.mxu0
    %v263 = vadd.f32 %v92, %v262
    %v264 = vpop.f32.mrf.mxu0
    %v265 = vadd.f32 %v92, %v264
    %266 = vdwg.mxu0
    %267 = vmatpush.bf16.msra.mxu0 0
    %268 = vmatpush.bf16.msra.mxu0 0
    %269 = vmatpush.bf16.msra.mxu0 0
    %270 = vmatpush.bf16.msra.mxu0 0
    %271 = vmatpush.bf16.msra.mxu0 0
    %272 = vmatpush.bf16.msra.mxu0 0
    %273 = vmatpush.bf16.msra.mxu0 %v178
    %274 = vmatpush.bf16.msra.mxu0 %v145
    %275 = vmatmul.bf16.gmra.mxu0 %v156
    %v276 = vpop.f32.mrf.mxu0
    %v277 = vadd.f32 %v93, %v276
    %v278 = vpop.f32.mrf.mxu0
    %v279 = vadd.f32 %v93, %v278
    %280 = vmatmul.bf16.gmra.mxu0 %v159
    %v281 = vpop.f32.mrf.mxu0
    %v282 = vadd.f32 %v93, %v281
    %v283 = vpop.f32.mrf.mxu0
    %v284 = vadd.f32 %v93, %v283
    %285 = vmatmul.bf16.gmra.mxu0 %v162
    %v286 = vpop.f32.mrf.mxu0
    %v287 = vadd.f32 %v93, %v286
    %v288 = vpop.f32.mrf.mxu0
    %v289 = vadd.f32 %v93, %v288
    %290 = vmatmul.bf16.gmra.mxu0 %v165
    %v291 = vpop.f32.mrf.mxu0
    %v292 = vadd.f32 %v93, %v291
    %v293 = vpop.f32.mrf.mxu0
    %v294 = vadd.f32 %v93, %v293
    %295 = vdwg.mxu0
    %296 = vst [vmem:[#allocation2] sm:$0xff] %v190
    %297 = vst [vmem:[#allocation2 + $0x8] sm:$0xff] %v219
    %298 = vst [vmem:[#allocation2 + $0x10] sm:$0xff] %v248
    %299 = vst [vmem:[#allocation2 + $0x18] sm:$0xff] %v277
    %300 = vst [vmem:[#allocation2 + $0x20] sm:$0xff] %v192
    %301 = vst [vmem:[#allocation2 + $0x28] sm:$0xff] %v221
    %302 = vst [vmem:[#allocation2 + $0x30] sm:$0xff] %v250
    %303 = vst [vmem:[#allocation2 + $0x38] sm:$0xff] %v279
    %304 = vst [vmem:[#allocation2 + $0x40] sm:$0xff] %v195
    %305 = vst [vmem:[#allocation2 + $0x48] sm:$0xff] %v224
    %306 = vst [vmem:[#allocation2 + $0x50] sm:$0xff] %v253
    %307 = vst [vmem:[#allocation2 + $0x58] sm:$0xff] %v282
    %308 = vst [vmem:[#allocation2 + $0x60] sm:$0xff] %v197
    %309 = vst [vmem:[#allocation2 + $0x68] sm:$0xff] %v226
    %310 = vst [vmem:[#allocation2 + $0x70] sm:$0xff] %v255
    %311 = vst [vmem:[#allocation2 + $0x78] sm:$0xff] %v284
    %312 = vst [vmem:[#allocation2 + $0x80] sm:$0xff] %v200
    %313 = vst [vmem:[#allocation2 + $0x88] sm:$0xff] %v229
    %314 = vst [vmem:[#allocation2 + $0x90] sm:$0xff] %v258
    %315 = vst [vmem:[#allocation2 + $0x98] sm:$0xff] %v287
    %316 = vst [vmem:[#allocation2 + $0xa0] sm:$0xff] %v202
    %317 = vst [vmem:[#allocation2 + $0xa8] sm:$0xff] %v231
    %318 = vst [vmem:[#allocation2 + $0xb0] sm:$0xff] %v260
    %319 = vst [vmem:[#allocation2 + $0xb8] sm:$0xff] %v289
    %320 = vst [vmem:[#allocation2 + $0xc0] sm:$0xff] %v205
    %321 = vst [vmem:[#allocation2 + $0xc8] sm:$0xff] %v234
    %322 = vst [vmem:[#allocation2 + $0xd0] sm:$0xff] %v263
    %323 = vst [vmem:[#allocation2 + $0xd8] sm:$0xff] %v292
    %324 = vst [vmem:[#allocation2 + $0xe0] sm:$0xff] %v207
    %325 = vst [vmem:[#allocation2 + $0xe8] sm:$0xff] %v236
    %326 = vst [vmem:[#allocation2 + $0xf0] sm:$0xff] %v265
    %327 = vst [vmem:[#allocation2 + $0xf8] sm:$0xff] %v294
    %s328 = smul.u32 0, 4
    %s329 = smul.addr %s328, 8
    %s330 = scalar_lea.vmem [#allocation2], %s329
    %v331 = vld [vmem:[%s330] sm:$0xff]
    %v332 = vld [vmem:[%s330 + $0x8] sm:$0xff]
    %v333 = vld [vmem:[%s330 + $0x10] sm:$0xff]
    %v334 = vld [vmem:[%s330 + $0x18] sm:$0xff]
    %v335 = vld [vmem:[#allocation6] sm:$0xff]
    %v336 = vld [vmem:[#allocation6 + $0x8] sm:$0xff]
    %v337 = vld [vmem:[#allocation6 + $0x10] sm:$0xff]
    %v338 = vld [vmem:[#allocation6 + $0x18] sm:$0xff]
    %v339 = vld [vmem:[#allocation6 + $0x20] sm:$0xff]
    %v340 = vld [vmem:[#allocation6 + $0x28] sm:$0xff]
    %v341 = vld [vmem:[#allocation6 + $0x30] sm:$0xff]
    %v342 = vld [vmem:[#allocation6 + $0x38] sm:$0xff]
    %v343 = vld [vmem:[#allocation6 + $0x40] sm:$0xff]
    %v344 = vld [vmem:[#allocation6 + $0x48] sm:$0xff]
    %v345 = vld [vmem:[#allocation6 + $0x50] sm:$0xff]
    %v346 = vld [vmem:[#allocation6 + $0x58] sm:$0xff]
    %v347 = vld [vmem:[#allocation6 + $0x60] sm:$0xff]
    %v348 = vld [vmem:[#allocation6 + $0x68] sm:$0xff]
    %v349 = vld [vmem:[#allocation6 + $0x70] sm:$0xff]
    %v350 = vld [vmem:[#allocation6 + $0x78] sm:$0xff]
    %v351 = vld [vmem:[#allocation6 + $0x80] sm:$0xff]
    %v352 = vld [vmem:[#allocation6 + $0x88] sm:$0xff]
    %v353 = vld [vmem:[#allocation6 + $0x90] sm:$0xff]
    %v354 = vld [vmem:[#allocation6 + $0x98] sm:$0xff]
    %v355 = vld [vmem:[#allocation6 + $0xa0] sm:$0xff]
    %v356 = vld [vmem:[#allocation6 + $0xa8] sm:$0xff]
    %v357 = vld [vmem:[#allocation6 + $0xb0] sm:$0xff]
    %v358 = vld [vmem:[#allocation6 + $0xb8] sm:$0xff]
    %v359 = vld [vmem:[#allocation6 + $0xc0] sm:$0xff]
    %v360 = vld [vmem:[#allocation6 + $0xc8] sm:$0xff]
    %v361 = vld [vmem:[#allocation6 + $0xd0] sm:$0xff]
    %v362 = vld [vmem:[#allocation6 + $0xd8] sm:$0xff]
    %v363 = vld [vmem:[#allocation6 + $0xe0] sm:$0xff]
    %v364 = vld [vmem:[#allocation6 + $0xe8] sm:$0xff]
    %v365 = vld [vmem:[#allocation6 + $0xf0] sm:$0xff]
    %v366 = vld [vmem:[#allocation6 + $0xf8] sm:$0xff]
    %v399 = vunpack.c.l.b16 %v335
    %v400 = vunpack.c.h.b16 %v335
    %v401 = vunpack.c.l.b16 %v336
    %v402 = vunpack.c.h.b16 %v336
    %v403 = vunpack.c.l.b16 %v337
    %v404 = vunpack.c.h.b16 %v337
    %v405 = vunpack.c.l.b16 %v338
    %v406 = vunpack.c.h.b16 %v338
    %v407 = vunpack.c.l.b16 %v339
    %v408 = vunpack.c.h.b16 %v339
    %v409 = vunpack.c.l.b16 %v340
    %v410 = vunpack.c.h.b16 %v340
    %v411 = vunpack.c.l.b16 %v341
    %v412 = vunpack.c.h.b16 %v341
    %v413 = vunpack.c.l.b16 %v342
    %v414 = vunpack.c.h.b16 %v342
    %v415 = vunpack.c.l.b16 %v343
    %v416 = vunpack.c.h.b16 %v343
    %v417 = vunpack.c.l.b16 %v344
    %v418 = vunpack.c.h.b16 %v344
    %v419 = vunpack.c.l.b16 %v345
    %v420 = vunpack.c.h.b16 %v345
    %v421 = vunpack.c.l.b16 %v346
    %v422 = vunpack.c.h.b16 %v346
    %v423 = vunpack.c.l.b16 %v347
    %v424 = vunpack.c.h.b16 %v347
    %v425 = vunpack.c.l.b16 %v348
    %v426 = vunpack.c.h.b16 %v348
    %v427 = vunpack.c.l.b16 %v349
    %v428 = vunpack.c.h.b16 %v349
    %v429 = vunpack.c.l.b16 %v350
    %v430 = vunpack.c.h.b16 %v350
    %v431 = vunpack.c.l.b16 %v351
    %v432 = vunpack.c.h.b16 %v351
    %v433 = vunpack.c.l.b16 %v352
    %v434 = vunpack.c.h.b16 %v352
    %v435 = vunpack.c.l.b16 %v353
    %v436 = vunpack.c.h.b16 %v353
    %v437 = vunpack.c.l.b16 %v354
    %v438 = vunpack.c.h.b16 %v354
    %v439 = vunpack.c.l.b16 %v355
    %v440 = vunpack.c.h.b16 %v355
    %v441 = vunpack.c.l.b16 %v356
    %v442 = vunpack.c.h.b16 %v356
    %v443 = vunpack.c.l.b16 %v357
    %v444 = vunpack.c.h.b16 %v357
    %v445 = vunpack.c.l.b16 %v358
    %v446 = vunpack.c.h.b16 %v358
    %v447 = vunpack.c.l.b16 %v359
    %v448 = vunpack.c.h.b16 %v359
    %v449 = vunpack.c.l.b16 %v360
    %v450 = vunpack.c.h.b16 %v360
    %v451 = vunpack.c.l.b16 %v361
    %v452 = vunpack.c.h.b16 %v361
    %v453 = vunpack.c.l.b16 %v362
    %v454 = vunpack.c.h.b16 %v362
    %v455 = vunpack.c.l.b16 %v363
    %v456 = vunpack.c.h.b16 %v363
    %v457 = vunpack.c.l.b16 %v364
    %v458 = vunpack.c.h.b16 %v364
    %v459 = vunpack.c.l.b16 %v365
    %v460 = vunpack.c.h.b16 %v365
    %v461 = vunpack.c.l.b16 %v366
    %v462 = vunpack.c.h.b16 %v366
    %v463 = vpack.c.b16 %v403, %v399
    %v464 = vpack.c.b16 %v404, %v400
    %v465 = vpack.c.b16 %v405, %v401
    %v466 = vpack.c.b16 %v406, %v402
    %v467 = vpack.c.b16 %v411, %v407
    %v468 = vpack.c.b16 %v412, %v408
    %v469 = vpack.c.b16 %v413, %v409
    %v470 = vpack.c.b16 %v414, %v410
    %v471 = vpack.c.b16 %v419, %v415
    %v472 = vpack.c.b16 %v420, %v416
    %v473 = vpack.c.b16 %v421, %v417
    %v474 = vpack.c.b16 %v422, %v418
    %v475 = vpack.c.b16 %v427, %v423
    %v476 = vpack.c.b16 %v428, %v424
    %v477 = vpack.c.b16 %v429, %v425
    %v478 = vpack.c.b16 %v430, %v426
    %v479 = vpack.c.b16 %v435, %v431
    %v480 = vpack.c.b16 %v436, %v432
    %v481 = vpack.c.b16 %v437, %v433
    %v482 = vpack.c.b16 %v438, %v434
    %v483 = vpack.c.b16 %v443, %v439
    %v484 = vpack.c.b16 %v444, %v440
    %v485 = vpack.c.b16 %v445, %v441
    %v486 = vpack.c.b16 %v446, %v442
    %v487 = vpack.c.b16 %v451, %v447
    %v488 = vpack.c.b16 %v452, %v448
    %v489 = vpack.c.b16 %v453, %v449
    %v490 = vpack.c.b16 %v454, %v450
    %v491 = vpack.c.b16 %v459, %v455
    %v492 = vpack.c.b16 %v460, %v456
    %v493 = vpack.c.b16 %v461, %v457
    %v494 = vpack.c.b16 %v462, %v458
    %527 = vmatpush.bf16.msra.mxu0 %v491
    %528 = vmatpush.bf16.msra.mxu0 %v487
    %529 = vmatpush.bf16.msra.mxu0 %v483
    %530 = vmatpush.bf16.msra.mxu0 %v479
    %531 = vmatpush.bf16.msra.mxu0 %v475
    %532 = vmatpush.bf16.msra.mxu0 %v471
    %533 = vmatpush.bf16.msra.mxu0 %v467
    %534 = vmatpush.bf16.msra.mxu0 %v463
    %535 = vmatmul.bf16.gmra.mxu0 0
    %v536 = vpop.f32.mrf.mxu0
    %v537 = vadd.f32 0.0, %v536
    %v538 = vpop.f32.mrf.mxu0
    %539 = vdwg.mxu0
    %540 = vmatpush.bf16.msra.mxu0 %v492
    %541 = vmatpush.bf16.msra.mxu0 %v488
    %542 = vmatpush.bf16.msra.mxu0 %v484
    %543 = vmatpush.bf16.msra.mxu0 %v480
    %544 = vmatpush.bf16.msra.mxu0 %v476
    %545 = vmatpush.bf16.msra.mxu0 %v472
    %546 = vmatpush.bf16.msra.mxu0 %v468
    %547 = vmatpush.bf16.msra.mxu0 %v464
    %548 = vmatmul.bf16.gmra.mxu0 0
    %v549 = vpop.f32.mrf.mxu0
    %v550 = vadd.f32 0.0, %v549
    %v551 = vpop.f32.mrf.mxu0
    %552 = vdwg.mxu0
    %553 = vmatpush.bf16.msra.mxu0 %v493
    %554 = vmatpush.bf16.msra.mxu0 %v489
    %555 = vmatpush.bf16.msra.mxu0 %v485
    %556 = vmatpush.bf16.msra.mxu0 %v481
    %557 = vmatpush.bf16.msra.mxu0 %v477
    %558 = vmatpush.bf16.msra.mxu0 %v473
    %559 = vmatpush.bf16.msra.mxu0 %v469
    %560 = vmatpush.bf16.msra.mxu0 %v465
    %561 = vmatmul.bf16.gmra.mxu0 0
    %v562 = vpop.f32.mrf.mxu0
    %v563 = vadd.f32 0.0, %v562
    %v564 = vpop.f32.mrf.mxu0
    %565 = vdwg.mxu0
    %566 = vmatpush.bf16.msra.mxu0 %v494
    %567 = vmatpush.bf16.msra.mxu0 %v490
    %568 = vmatpush.bf16.msra.mxu0 %v486
    %569 = vmatpush.bf16.msra.mxu0 %v482
    %570 = vmatpush.bf16.msra.mxu0 %v478
    %571 = vmatpush.bf16.msra.mxu0 %v474
    %572 = vmatpush.bf16.msra.mxu0 %v470
    %573 = vmatpush.bf16.msra.mxu0 %v466
    %574 = vmatmul.bf16.gmra.mxu0 0
    %v575 = vpop.f32.mrf.mxu0
    %v576 = vadd.f32 0.0, %v575
    %v577 = vpop.f32.mrf.mxu0
    %578 = vdwg.mxu0
    %v579 = vadd.f32 %v331, %v537
    %v580 = vadd.f32 %v332, %v550
    %v581 = vadd.f32 %v333, %v563
    %v582 = vadd.f32 %v334, %v576
    %v583 = vxor.u32 %v579, 2147483648
    %v584 = vmul.f32 %v583, 1.442695
    %v585 = vpow.pop %v584
    %v586 = vadd.f32 %v585, 1.0
    %v587 = vrcp.pop %v586
    %v588 = vmul.f32 %v586, %v587
    %v589 = vsub.f32 1.0, %v588
    %v590 = vmul.f32 %v587, %v589
    %v591 = vadd.f32 %v587, %v590
    %vm592 = vweird.f32 %v586
    %vm593 = vweird.f32 %v587
    %vm594 = vmor %vm592, %vm593
    %v595 = vsel %vm594, %v587, %v591
    %v596 = vand.u32 2147483647, %v586
    %vm597 = vcmp.eq.f32.partialorder %v596, 8.507059e+37
    %v598 = vand.u32 %v586, 2147483648
    %v599 = vor.u32 1.1754944e-38, %v598
    %v600 = vsel %vm597, %v599, %v595
    %v601 = vmul.f32 1.0, %v600
    %v602 = vxor.u32 %v580, 2147483648
    %v603 = vmul.f32 %v602, 1.442695
    %v604 = vpow.pop %v603
    %v605 = vadd.f32 %v604, 1.0
    %v606 = vrcp.pop %v605
    %v607 = vmul.f32 %v605, %v606
    %v608 = vsub.f32 1.0, %v607
    %v609 = vmul.f32 %v606, %v608
    %v610 = vadd.f32 %v606, %v609
    %vm611 = vweird.f32 %v605
    %vm612 = vweird.f32 %v606
    %vm613 = vmor %vm611, %vm612
    %v614 = vsel %vm613, %v606, %v610
    %v615 = vand.u32 2147483647, %v605
    %vm616 = vcmp.eq.f32.partialorder %v615, 8.507059e+37
    %v617 = vand.u32 %v605, 2147483648
    %v618 = vor.u32 1.1754944e-38, %v617
    %v619 = vsel %vm616, %v618, %v614
    %v620 = vmul.f32 1.0, %v619
    %v621 = vtanh.pop %v581
    %v622 = vxor.u32 %v582, 2147483648
    %v623 = vmul.f32 %v622, 1.442695
    %v624 = vpow.pop %v623
    %v625 = vadd.f32 %v624, 1.0
    %v626 = vrcp.pop %v625
    %v627 = vmul.f32 %v625, %v626
    %v628 = vsub.f32 1.0, %v627
    %v629 = vmul.f32 %v626, %v628
    %v630 = vadd.f32 %v626, %v629
    %vm631 = vweird.f32 %v625
    %vm632 = vweird.f32 %v626
    %vm633 = vmor %vm631, %vm632
    %v634 = vsel %vm633, %v626, %v630
    %v635 = vand.u32 2147483647, %v625
    %vm636 = vcmp.eq.f32.partialorder %v635, 8.507059e+37
    %v637 = vand.u32 %v625, 2147483648
    %v638 = vor.u32 1.1754944e-38, %v637
    %v639 = vsel %vm636, %v638, %v634
    %v640 = vmul.f32 1.0, %v639
    %v641 = vmul.f32 %v620, 0.0
    %v642 = vmul.f32 %v601, %v621
    %v643 = vadd.f32 %v641, %v642
    %v644 = vtanh.pop %v643
    %v645 = vmul.f32 %v640, %v644
    %s646 = smul.u32 1, 4
    %s647 = smul.addr %s646, 8
    %s648 = scalar_lea.vmem [#allocation2], %s647
    %v649 = vld [vmem:[%s648] sm:$0xff]
    %v650 = vld [vmem:[%s648 + $0x8] sm:$0xff]
    %v651 = vld [vmem:[%s648 + $0x10] sm:$0xff]
    %v652 = vld [vmem:[%s648 + $0x18] sm:$0xff]
    %v653 = vpack.c.bf16 %v645, %v645
    %654 = vmatpush.bf16.msra.mxu0 %v491
    %655 = vmatpush.bf16.msra.mxu0 %v487
    %656 = vmatpush.bf16.msra.mxu0 %v483
    %657 = vmatpush.bf16.msra.mxu0 %v479
    %658 = vmatpush.bf16.msra.mxu0 %v475
    %659 = vmatpush.bf16.msra.mxu0 %v471
    %660 = vmatpush.bf16.msra.mxu0 %v467
    %661 = vmatpush.bf16.msra.mxu0 %v463
    %662 = vmatmul.bf16.gmra.mxu0 %v653
    %v663 = vpop.f32.mrf.mxu0
    %v664 = vadd.f32 0.0, %v663
    %v665 = vpop.f32.mrf.mxu0
    %666 = vdwg.mxu0
    %667 = vmatpush.bf16.msra.mxu0 %v492
    %668 = vmatpush.bf16.msra.mxu0 %v488
    %669 = vmatpush.bf16.msra.mxu0 %v484
    %670 = vmatpush.bf16.msra.mxu0 %v480
    %671 = vmatpush.bf16.msra.mxu0 %v476
    %672 = vmatpush.bf16.msra.mxu0 %v472
    %673 = vmatpush.bf16.msra.mxu0 %v468
    %674 = vmatpush.bf16.msra.mxu0 %v464
    %675 = vmatmul.bf16.gmra.mxu0 %v653
    %v676 = vpop.f32.mrf.mxu0
    %v677 = vadd.f32 0.0, %v676
    %v678 = vpop.f32.mrf.mxu0
    %679 = vdwg.mxu0
    %680 = vmatpush.bf16.msra.mxu0 %v493
    %681 = vmatpush.bf16.msra.mxu0 %v489
    %682 = vmatpush.bf16.msra.mxu0 %v485
    %683 = vmatpush.bf16.msra.mxu0 %v481
    %684 = vmatpush.bf16.msra.mxu0 %v477
    %685 = vmatpush.bf16.msra.mxu0 %v473
    %686 = vmatpush.bf16.msra.mxu0 %v469
    %687 = vmatpush.bf16.msra.mxu0 %v465
    %688 = vmatmul.bf16.gmra.mxu0 %v653
    %v689 = vpop.f32.mrf.mxu0
    %v690 = vadd.f32 0.0, %v689
    %v691 = vpop.f32.mrf.mxu0
    %692 = vdwg.mxu0
    %693 = vmatpush.bf16.msra.mxu0 %v494
    %694 = vmatpush.bf16.msra.mxu0 %v490
    %695 = vmatpush.bf16.msra.mxu0 %v486
    %696 = vmatpush.bf16.msra.mxu0 %v482
    %697 = vmatpush.bf16.msra.mxu0 %v478
    %698 = vmatpush.bf16.msra.mxu0 %v474
    %699 = vmatpush.bf16.msra.mxu0 %v470
    %700 = vmatpush.bf16.msra.mxu0 %v466
    %701 = vmatmul.bf16.gmra.mxu0 %v653
    %v702 = vpop.f32.mrf.mxu0
    %v703 = vadd.f32 0.0, %v702
    %v704 = vpop.f32.mrf.mxu0
    %705 = vdwg.mxu0
    %v706 = vadd.f32 %v649, %v664
    %v707 = vadd.f32 %v650, %v677
    %v708 = vadd.f32 %v651, %v690
    %v709 = vadd.f32 %v652, %v703
    %v710 = vxor.u32 %v706, 2147483648
    %v711 = vmul.f32 %v710, 1.442695
    %v712 = vpow.pop %v711
    %v713 = vadd.f32 %v712, 1.0
    %v714 = vrcp.pop %v713
    %v715 = vmul.f32 %v713, %v714
    %v716 = vsub.f32 1.0, %v715
    %v717 = vmul.f32 %v714, %v716
    %v718 = vadd.f32 %v714, %v717
    %vm719 = vweird.f32 %v713
    %vm720 = vweird.f32 %v714
    %vm721 = vmor %vm719, %vm720
    %v722 = vsel %vm721, %v714, %v718
    %v723 = vand.u32 2147483647, %v713
    %vm724 = vcmp.eq.f32.partialorder %v723, 8.507059e+37
    %v725 = vand.u32 %v713, 2147483648
    %v726 = vor.u32 1.1754944e-38, %v725
    %v727 = vsel %vm724, %v726, %v722
    %v728 = vmul.f32 1.0, %v727
    %v729 = vxor.u32 %v707, 2147483648
    %v730 = vmul.f32 %v729, 1.442695
    %v731 = vpow.pop %v730
    %v732 = vadd.f32 %v731, 1.0
    %v733 = vrcp.pop %v732
    %v734 = vmul.f32 %v732, %v733
    %v735 = vsub.f32 1.0, %v734
    %v736 = vmul.f32 %v733, %v735
    %v737 = vadd.f32 %v733, %v736
    %vm738 = vweird.f32 %v732
    %vm739 = vweird.f32 %v733
    %vm740 = vmor %vm738, %vm739
    %v741 = vsel %vm740, %v733, %v737
    %v742 = vand.u32 2147483647, %v732
    %vm743 = vcmp.eq.f32.partialorder %v742, 8.507059e+37
    %v744 = vand.u32 %v732, 2147483648
    %v745 = vor.u32 1.1754944e-38, %v744
    %v746 = vsel %vm743, %v745, %v741
    %v747 = vmul.f32 1.0, %v746
    %v748 = vtanh.pop %v708
    %v749 = vxor.u32 %v709, 2147483648
    %v750 = vmul.f32 %v749, 1.442695
    %v751 = vpow.pop %v750
    %v752 = vadd.f32 %v751, 1.0
    %v753 = vrcp.pop %v752
    %v754 = vmul.f32 %v752, %v753
    %v755 = vsub.f32 1.0, %v754
    %v756 = vmul.f32 %v753, %v755
    %v757 = vadd.f32 %v753, %v756
    %vm758 = vweird.f32 %v752
    %vm759 = vweird.f32 %v753
    %vm760 = vmor %vm758, %vm759
    %v761 = vsel %vm760, %v753, %v757
    %v762 = vand.u32 2147483647, %v752
    %vm763 = vcmp.eq.f32.partialorder %v762, 8.507059e+37
    %v764 = vand.u32 %v752, 2147483648
    %v765 = vor.u32 1.1754944e-38, %v764
    %v766 = vsel %vm763, %v765, %v761
    %v767 = vmul.f32 1.0, %v766
    %v768 = vmul.f32 %v747, %v643
    %v769 = vmul.f32 %v728, %v748
    %v770 = vadd.f32 %v768, %v769
    %v771 = vtanh.pop %v770
    %v772 = vmul.f32 %v767, %v771
    %s773 = smul.u32 2, 4
    %s774 = smul.addr %s773, 8
    %s775 = scalar_lea.vmem [#allocation2], %s774
    %v776 = vld [vmem:[%s775] sm:$0xff]
    %v777 = vld [vmem:[%s775 + $0x8] sm:$0xff]
    %v778 = vld [vmem:[%s775 + $0x10] sm:$0xff]
    %v779 = vld [vmem:[%s775 + $0x18] sm:$0xff]
    %v780 = vpack.c.bf16 %v772, %v772
    %781 = vmatpush.bf16.msra.mxu0 %v491
    %782 = vmatpush.bf16.msra.mxu0 %v487
    %783 = vmatpush.bf16.msra.mxu0 %v483
    %784 = vmatpush.bf16.msra.mxu0 %v479
    %785 = vmatpush.bf16.msra.mxu0 %v475
    %786 = vmatpush.bf16.msra.mxu0 %v471
    %787 = vmatpush.bf16.msra.mxu0 %v467
    %788 = vmatpush.bf16.msra.mxu0 %v463
    %789 = vmatmul.bf16.gmra.mxu0 %v780
    %v790 = vpop.f32.mrf.mxu0
    %v791 = vadd.f32 0.0, %v790
    %v792 = vpop.f32.mrf.mxu0
    %793 = vdwg.mxu0
    %794 = vmatpush.bf16.msra.mxu0 %v492
    %795 = vmatpush.bf16.msra.mxu0 %v488
    %796 = vmatpush.bf16.msra.mxu0 %v484
    %797 = vmatpush.bf16.msra.mxu0 %v480
    %798 = vmatpush.bf16.msra.mxu0 %v476
    %799 = vmatpush.bf16.msra.mxu0 %v472
    %800 = vmatpush.bf16.msra.mxu0 %v468
    %801 = vmatpush.bf16.msra.mxu0 %v464
    %802 = vmatmul.bf16.gmra.mxu0 %v780
    %v803 = vpop.f32.mrf.mxu0
    %v804 = vadd.f32 0.0, %v803
    %v805 = vpop.f32.mrf.mxu0
    %806 = vdwg.mxu0
    %807 = vmatpush.bf16.msra.mxu0 %v493
    %808 = vmatpush.bf16.msra.mxu0 %v489
    %809 = vmatpush.bf16.msra.mxu0 %v485
    %810 = vmatpush.bf16.msra.mxu0 %v481
    %811 = vmatpush.bf16.msra.mxu0 %v477
    %812 = vmatpush.bf16.msra.mxu0 %v473
    %813 = vmatpush.bf16.msra.mxu0 %v469
    %814 = vmatpush.bf16.msra.mxu0 %v465
    %815 = vmatmul.bf16.gmra.mxu0 %v780
    %v816 = vpop.f32.mrf.mxu0
    %v817 = vadd.f32 0.0, %v816
    %v818 = vpop.f32.mrf.mxu0
    %819 = vdwg.mxu0
    %820 = vmatpush.bf16.msra.mxu0 %v494
    %821 = vmatpush.bf16.msra.mxu0 %v490
    %822 = vmatpush.bf16.msra.mxu0 %v486
    %823 = vmatpush.bf16.msra.mxu0 %v482
    %824 = vmatpush.bf16.msra.mxu0 %v478
    %825 = vmatpush.bf16.msra.mxu0 %v474
    %826 = vmatpush.bf16.msra.mxu0 %v470
    %827 = vmatpush.bf16.msra.mxu0 %v466
    %828 = vmatmul.bf16.gmra.mxu0 %v780
    %v829 = vpop.f32.mrf.mxu0
    %v830 = vadd.f32 0.0, %v829
    %v831 = vpop.f32.mrf.mxu0
    %832 = vdwg.mxu0
    %v833 = vadd.f32 %v776, %v791
    %v834 = vadd.f32 %v777, %v804
    %v835 = vadd.f32 %v778, %v817
    %v836 = vadd.f32 %v779, %v830
    %v837 = vxor.u32 %v833, 2147483648
    %v838 = vmul.f32 %v837, 1.442695
    %v839 = vpow.pop %v838
    %v840 = vadd.f32 %v839, 1.0
    %v841 = vrcp.pop %v840
    %v842 = vmul.f32 %v840, %v841
    %v843 = vsub.f32 1.0, %v842
    %v844 = vmul.f32 %v841, %v843
    %v845 = vadd.f32 %v841, %v844
    %vm846 = vweird.f32 %v840
    %vm847 = vweird.f32 %v841
    %vm848 = vmor %vm846, %vm847
    %v849 = vsel %vm848, %v841, %v845
    %v850 = vand.u32 2147483647, %v840
    %vm851 = vcmp.eq.f32.partialorder %v850, 8.507059e+37
    %v852 = vand.u32 %v840, 2147483648
    %v853 = vor.u32 1.1754944e-38, %v852
    %v854 = vsel %vm851, %v853, %v849
    %v855 = vmul.f32 1.0, %v854
    %v856 = vxor.u32 %v834, 2147483648
    %v857 = vmul.f32 %v856, 1.442695
    %v858 = vpow.pop %v857
    %v859 = vadd.f32 %v858, 1.0
    %v860 = vrcp.pop %v859
    %v861 = vmul.f32 %v859, %v860
    %v862 = vsub.f32 1.0, %v861
    %v863 = vmul.f32 %v860, %v862
    %v864 = vadd.f32 %v860, %v863
    %vm865 = vweird.f32 %v859
    %vm866 = vweird.f32 %v860
    %vm867 = vmor %vm865, %vm866
    %v868 = vsel %vm867, %v860, %v864
    %v869 = vand.u32 2147483647, %v859
    %vm870 = vcmp.eq.f32.partialorder %v869, 8.507059e+37
    %v871 = vand.u32 %v859, 2147483648
    %v872 = vor.u32 1.1754944e-38, %v871
    %v873 = vsel %vm870, %v872, %v868
    %v874 = vmul.f32 1.0, %v873
    %v875 = vtanh.pop %v835
    %v876 = vxor.u32 %v836, 2147483648
    %v877 = vmul.f32 %v876, 1.442695
    %v878 = vpow.pop %v877
    %v879 = vadd.f32 %v878, 1.0
    %v880 = vrcp.pop %v879
    %v881 = vmul.f32 %v879, %v880
    %v882 = vsub.f32 1.0, %v881
    %v883 = vmul.f32 %v880, %v882
    %v884 = vadd.f32 %v880, %v883
    %vm885 = vweird.f32 %v879
    %vm886 = vweird.f32 %v880
    %vm887 = vmor %vm885, %vm886
    %v888 = vsel %vm887, %v880, %v884
    %v889 = vand.u32 2147483647, %v879
    %vm890 = vcmp.eq.f32.partialorder %v889, 8.507059e+37
    %v891 = vand.u32 %v879, 2147483648
    %v892 = vor.u32 1.1754944e-38, %v891
    %v893 = vsel %vm890, %v892, %v888
    %v894 = vmul.f32 1.0, %v893
    %v895 = vmul.f32 %v874, %v770
    %v896 = vmul.f32 %v855, %v875
    %v897 = vadd.f32 %v895, %v896
    %v898 = vtanh.pop %v897
    %v899 = vmul.f32 %v894, %v898
    %s900 = smul.u32 3, 4
    %s901 = smul.addr %s900, 8
    %s902 = scalar_lea.vmem [#allocation2], %s901
    %v903 = vld [vmem:[%s902] sm:$0xff]
    %v904 = vld [vmem:[%s902 + $0x8] sm:$0xff]
    %v905 = vld [vmem:[%s902 + $0x10] sm:$0xff]
    %v906 = vld [vmem:[%s902 + $0x18] sm:$0xff]
    %v907 = vpack.c.bf16 %v899, %v899
    %908 = vmatpush.bf16.msra.mxu0 %v491
    %909 = vmatpush.bf16.msra.mxu0 %v487
    %910 = vmatpush.bf16.msra.mxu0 %v483
    %911 = vmatpush.bf16.msra.mxu0 %v479
    %912 = vmatpush.bf16.msra.mxu0 %v475
    %913 = vmatpush.bf16.msra.mxu0 %v471
    %914 = vmatpush.bf16.msra.mxu0 %v467
    %915 = vmatpush.bf16.msra.mxu0 %v463
    %916 = vmatmul.bf16.gmra.mxu0 %v907
    %v917 = vpop.f32.mrf.mxu0
    %v918 = vadd.f32 0.0, %v917
    %v919 = vpop.f32.mrf.mxu0
    %920 = vdwg.mxu0
    %921 = vmatpush.bf16.msra.mxu0 %v492
    %922 = vmatpush.bf16.msra.mxu0 %v488
    %923 = vmatpush.bf16.msra.mxu0 %v484
    %924 = vmatpush.bf16.msra.mxu0 %v480
    %925 = vmatpush.bf16.msra.mxu0 %v476
    %926 = vmatpush.bf16.msra.mxu0 %v472
    %927 = vmatpush.bf16.msra.mxu0 %v468
    %928 = vmatpush.bf16.msra.mxu0 %v464
    %929 = vmatmul.bf16.gmra.mxu0 %v907
    %v930 = vpop.f32.mrf.mxu0
    %v931 = vadd.f32 0.0, %v930
    %v932 = vpop.f32.mrf.mxu0
    %933 = vdwg.mxu0
    %934 = vmatpush.bf16.msra.mxu0 %v493
    %935 = vmatpush.bf16.msra.mxu0 %v489
    %936 = vmatpush.bf16.msra.mxu0 %v485
    %937 = vmatpush.bf16.msra.mxu0 %v481
    %938 = vmatpush.bf16.msra.mxu0 %v477
    %939 = vmatpush.bf16.msra.mxu0 %v473
    %940 = vmatpush.bf16.msra.mxu0 %v469
    %941 = vmatpush.bf16.msra.mxu0 %v465
    %942 = vmatmul.bf16.gmra.mxu0 %v907
    %v943 = vpop.f32.mrf.mxu0
    %v944 = vadd.f32 0.0, %v943
    %v945 = vpop.f32.mrf.mxu0
    %946 = vdwg.mxu0
    %947 = vmatpush.bf16.msra.mxu0 %v494
    %948 = vmatpush.bf16.msra.mxu0 %v490
    %949 = vmatpush.bf16.msra.mxu0 %v486
    %950 = vmatpush.bf16.msra.mxu0 %v482
    %951 = vmatpush.bf16.msra.mxu0 %v478
    %952 = vmatpush.bf16.msra.mxu0 %v474
    %953 = vmatpush.bf16.msra.mxu0 %v470
    %954 = vmatpush.bf16.msra.mxu0 %v466
    %955 = vmatmul.bf16.gmra.mxu0 %v907
    %v956 = vpop.f32.mrf.mxu0
    %v957 = vadd.f32 0.0, %v956
    %v958 = vpop.f32.mrf.mxu0
    %959 = vdwg.mxu0
    %v960 = vadd.f32 %v903, %v918
    %v961 = vadd.f32 %v904, %v931
    %v962 = vadd.f32 %v905, %v944
    %v963 = vadd.f32 %v906, %v957
    %v964 = vxor.u32 %v960, 2147483648
    %v965 = vmul.f32 %v964, 1.442695
    %v966 = vpow.pop %v965
    %v967 = vadd.f32 %v966, 1.0
    %v968 = vrcp.pop %v967
    %v969 = vmul.f32 %v967, %v968
    %v970 = vsub.f32 1.0, %v969
    %v971 = vmul.f32 %v968, %v970
    %v972 = vadd.f32 %v968, %v971
    %vm973 = vweird.f32 %v967
    %vm974 = vweird.f32 %v968
    %vm975 = vmor %vm973, %vm974
    %v976 = vsel %vm975, %v968, %v972
    %v977 = vand.u32 2147483647, %v967
    %vm978 = vcmp.eq.f32.partialorder %v977, 8.507059e+37
    %v979 = vand.u32 %v967, 2147483648
    %v980 = vor.u32 1.1754944e-38, %v979
    %v981 = vsel %vm978, %v980, %v976
    %v982 = vmul.f32 1.0, %v981
    %v983 = vxor.u32 %v961, 2147483648
    %v984 = vmul.f32 %v983, 1.442695
    %v985 = vpow.pop %v984
    %v986 = vadd.f32 %v985, 1.0
    %v987 = vrcp.pop %v986
    %v988 = vmul.f32 %v986, %v987
    %v989 = vsub.f32 1.0, %v988
    %v990 = vmul.f32 %v987, %v989
    %v991 = vadd.f32 %v987, %v990
    %vm992 = vweird.f32 %v986
    %vm993 = vweird.f32 %v987
    %vm994 = vmor %vm992, %vm993
    %v995 = vsel %vm994, %v987, %v991
    %v996 = vand.u32 2147483647, %v986
    %vm997 = vcmp.eq.f32.partialorder %v996, 8.507059e+37
    %v998 = vand.u32 %v986, 2147483648
    %v999 = vor.u32 1.1754944e-38, %v998
    %v1000 = vsel %vm997, %v999, %v995
    %v1001 = vmul.f32 1.0, %v1000
    %v1002 = vtanh.pop %v962
    %v1003 = vxor.u32 %v963, 2147483648
    %v1004 = vmul.f32 %v1003, 1.442695
    %v1005 = vpow.pop %v1004
    %v1006 = vadd.f32 %v1005, 1.0
    %v1007 = vrcp.pop %v1006
    %v1008 = vmul.f32 %v1006, %v1007
    %v1009 = vsub.f32 1.0, %v1008
    %v1010 = vmul.f32 %v1007, %v1009
    %v1011 = vadd.f32 %v1007, %v1010
    %vm1012 = vweird.f32 %v1006
    %vm1013 = vweird.f32 %v1007
    %vm1014 = vmor %vm1012, %vm1013
    %v1015 = vsel %vm1014, %v1007, %v1011
    %v1016 = vand.u32 2147483647, %v1006
    %vm1017 = vcmp.eq.f32.partialorder %v1016, 8.507059e+37
    %v1018 = vand.u32 %v1006, 2147483648
    %v1019 = vor.u32 1.1754944e-38, %v1018
    %v1020 = vsel %vm1017, %v1019, %v1015
    %v1021 = vmul.f32 1.0, %v1020
    %v1022 = vmul.f32 %v1001, %v897
    %v1023 = vmul.f32 %v982, %v1002
    %v1024 = vadd.f32 %v1022, %v1023
    %v1025 = vtanh.pop %v1024
    %v1026 = vmul.f32 %v1021, %v1025
    %s1027 = smul.u32 4, 4
    %s1028 = smul.addr %s1027, 8
    %s1029 = scalar_lea.vmem [#allocation2], %s1028
    %v1030 = vld [vmem:[%s1029] sm:$0xff]
    %v1031 = vld [vmem:[%s1029 + $0x8] sm:$0xff]
    %v1032 = vld [vmem:[%s1029 + $0x10] sm:$0xff]
    %v1033 = vld [vmem:[%s1029 + $0x18] sm:$0xff]
    %v1034 = vpack.c.bf16 %v1026, %v1026
    %1035 = vmatpush.bf16.msra.mxu0 %v491
    %1036 = vmatpush.bf16.msra.mxu0 %v487
    %1037 = vmatpush.bf16.msra.mxu0 %v483
    %1038 = vmatpush.bf16.msra.mxu0 %v479
    %1039 = vmatpush.bf16.msra.mxu0 %v475
    %1040 = vmatpush.bf16.msra.mxu0 %v471
    %1041 = vmatpush.bf16.msra.mxu0 %v467
    %1042 = vmatpush.bf16.msra.mxu0 %v463
    %1043 = vmatmul.bf16.gmra.mxu0 %v1034
    %v1044 = vpop.f32.mrf.mxu0
    %v1045 = vadd.f32 0.0, %v1044
    %v1046 = vpop.f32.mrf.mxu0
    %1047 = vdwg.mxu0
    %1048 = vmatpush.bf16.msra.mxu0 %v492
    %1049 = vmatpush.bf16.msra.mxu0 %v488
    %1050 = vmatpush.bf16.msra.mxu0 %v484
    %1051 = vmatpush.bf16.msra.mxu0 %v480
    %1052 = vmatpush.bf16.msra.mxu0 %v476
    %1053 = vmatpush.bf16.msra.mxu0 %v472
    %1054 = vmatpush.bf16.msra.mxu0 %v468
    %1055 = vmatpush.bf16.msra.mxu0 %v464
    %1056 = vmatmul.bf16.gmra.mxu0 %v1034
    %v1057 = vpop.f32.mrf.mxu0
    %v1058 = vadd.f32 0.0, %v1057
    %v1059 = vpop.f32.mrf.mxu0
    %1060 = vdwg.mxu0
    %1061 = vmatpush.bf16.msra.mxu0 %v493
    %1062 = vmatpush.bf16.msra.mxu0 %v489
    %1063 = vmatpush.bf16.msra.mxu0 %v485
    %1064 = vmatpush.bf16.msra.mxu0 %v481
    %1065 = vmatpush.bf16.msra.mxu0 %v477
    %1066 = vmatpush.bf16.msra.mxu0 %v473
    %1067 = vmatpush.bf16.msra.mxu0 %v469
    %1068 = vmatpush.bf16.msra.mxu0 %v465
    %1069 = vmatmul.bf16.gmra.mxu0 %v1034
    %v1070 = vpop.f32.mrf.mxu0
    %v1071 = vadd.f32 0.0, %v1070
    %v1072 = vpop.f32.mrf.mxu0
    %1073 = vdwg.mxu0
    %1074 = vmatpush.bf16.msra.mxu0 %v494
    %1075 = vmatpush.bf16.msra.mxu0 %v490
    %1076 = vmatpush.bf16.msra.mxu0 %v486
    %1077 = vmatpush.bf16.msra.mxu0 %v482
    %1078 = vmatpush.bf16.msra.mxu0 %v478
    %1079 = vmatpush.bf16.msra.mxu0 %v474
    %1080 = vmatpush.bf16.msra.mxu0 %v470
    %1081 = vmatpush.bf16.msra.mxu0 %v466
    %1082 = vmatmul.bf16.gmra.mxu0 %v1034
    %v1083 = vpop.f32.mrf.mxu0
    %v1084 = vadd.f32 0.0, %v1083
    %v1085 = vpop.f32.mrf.mxu0
    %1086 = vdwg.mxu0
    %v1087 = vadd.f32 %v1030, %v1045
    %v1088 = vadd.f32 %v1031, %v1058
    %v1089 = vadd.f32 %v1032, %v1071
    %v1090 = vadd.f32 %v1033, %v1084
    %v1091 = vxor.u32 %v1087, 2147483648
    %v1092 = vmul.f32 %v1091, 1.442695
    %v1093 = vpow.pop %v1092
    %v1094 = vadd.f32 %v1093, 1.0
    %v1095 = vrcp.pop %v1094
    %v1096 = vmul.f32 %v1094, %v1095
    %v1097 = vsub.f32 1.0, %v1096
    %v1098 = vmul.f32 %v1095, %v1097
    %v1099 = vadd.f32 %v1095, %v1098
    %vm1100 = vweird.f32 %v1094
    %vm1101 = vweird.f32 %v1095
    %vm1102 = vmor %vm1100, %vm1101
    %v1103 = vsel %vm1102, %v1095, %v1099
    %v1104 = vand.u32 2147483647, %v1094
    %vm1105 = vcmp.eq.f32.partialorder %v1104, 8.507059e+37
    %v1106 = vand.u32 %v1094, 2147483648
    %v1107 = vor.u32 1.1754944e-38, %v1106
    %v1108 = vsel %vm1105, %v1107, %v1103
    %v1109 = vmul.f32 1.0, %v1108
    %v1110 = vxor.u32 %v1088, 2147483648
    %v1111 = vmul.f32 %v1110, 1.442695
    %v1112 = vpow.pop %v1111
    %v1113 = vadd.f32 %v1112, 1.0
    %v1114 = vrcp.pop %v1113
    %v1115 = vmul.f32 %v1113, %v1114
    %v1116 = vsub.f32 1.0, %v1115
    %v1117 = vmul.f32 %v1114, %v1116
    %v1118 = vadd.f32 %v1114, %v1117
    %vm1119 = vweird.f32 %v1113
    %vm1120 = vweird.f32 %v1114
    %vm1121 = vmor %vm1119, %vm1120
    %v1122 = vsel %vm1121, %v1114, %v1118
    %v1123 = vand.u32 2147483647, %v1113
    %vm1124 = vcmp.eq.f32.partialorder %v1123, 8.507059e+37
    %v1125 = vand.u32 %v1113, 2147483648
    %v1126 = vor.u32 1.1754944e-38, %v1125
    %v1127 = vsel %vm1124, %v1126, %v1122
    %v1128 = vmul.f32 1.0, %v1127
    %v1129 = vtanh.pop %v1089
    %v1130 = vxor.u32 %v1090, 2147483648
    %v1131 = vmul.f32 %v1130, 1.442695
    %v1132 = vpow.pop %v1131
    %v1133 = vadd.f32 %v1132, 1.0
    %v1134 = vrcp.pop %v1133
    %v1135 = vmul.f32 %v1133, %v1134
    %v1136 = vsub.f32 1.0, %v1135
    %v1137 = vmul.f32 %v1134, %v1136
    %v1138 = vadd.f32 %v1134, %v1137
    %vm1139 = vweird.f32 %v1133
    %vm1140 = vweird.f32 %v1134
    %vm1141 = vmor %vm1139, %vm1140
    %v1142 = vsel %vm1141, %v1134, %v1138
    %v1143 = vand.u32 2147483647, %v1133
    %vm1144 = vcmp.eq.f32.partialorder %v1143, 8.507059e+37
    %v1145 = vand.u32 %v1133, 2147483648
    %v1146 = vor.u32 1.1754944e-38, %v1145
    %v1147 = vsel %vm1144, %v1146, %v1142
    %v1148 = vmul.f32 1.0, %v1147
    %v1149 = vmul.f32 %v1128, %v1024
    %v1150 = vmul.f32 %v1109, %v1129
    %v1151 = vadd.f32 %v1149, %v1150
    %v1152 = vtanh.pop %v1151
    %v1153 = vmul.f32 %v1148, %v1152
    %s1154 = smul.u32 5, 4
    %s1155 = smul.addr %s1154, 8
    %s1156 = scalar_lea.vmem [#allocation2], %s1155
    %v1157 = vld [vmem:[%s1156] sm:$0xff]
    %v1158 = vld [vmem:[%s1156 + $0x8] sm:$0xff]
    %v1159 = vld [vmem:[%s1156 + $0x10] sm:$0xff]
    %v1160 = vld [vmem:[%s1156 + $0x18] sm:$0xff]
    %v1161 = vpack.c.bf16 %v1153, %v1153
    %1162 = vmatpush.bf16.msra.mxu0 %v491
    %1163 = vmatpush.bf16.msra.mxu0 %v487
    %1164 = vmatpush.bf16.msra.mxu0 %v483
    %1165 = vmatpush.bf16.msra.mxu0 %v479
    %1166 = vmatpush.bf16.msra.mxu0 %v475
    %1167 = vmatpush.bf16.msra.mxu0 %v471
    %1168 = vmatpush.bf16.msra.mxu0 %v467
    %1169 = vmatpush.bf16.msra.mxu0 %v463
    %1170 = vmatmul.bf16.gmra.mxu0 %v1161
    %v1171 = vpop.f32.mrf.mxu0
    %v1172 = vadd.f32 0.0, %v1171
    %v1173 = vpop.f32.mrf.mxu0
    %1174 = vdwg.mxu0
    %1175 = vmatpush.bf16.msra.mxu0 %v492
    %1176 = vmatpush.bf16.msra.mxu0 %v488
    %1177 = vmatpush.bf16.msra.mxu0 %v484
    %1178 = vmatpush.bf16.msra.mxu0 %v480
    %1179 = vmatpush.bf16.msra.mxu0 %v476
    %1180 = vmatpush.bf16.msra.mxu0 %v472
    %1181 = vmatpush.bf16.msra.mxu0 %v468
    %1182 = vmatpush.bf16.msra.mxu0 %v464
    %1183 = vmatmul.bf16.gmra.mxu0 %v1161
    %v1184 = vpop.f32.mrf.mxu0
    %v1185 = vadd.f32 0.0, %v1184
    %v1186 = vpop.f32.mrf.mxu0
    %1187 = vdwg.mxu0
    %1188 = vmatpush.bf16.msra.mxu0 %v493
    %1189 = vmatpush.bf16.msra.mxu0 %v489
    %1190 = vmatpush.bf16.msra.mxu0 %v485
    %1191 = vmatpush.bf16.msra.mxu0 %v481
    %1192 = vmatpush.bf16.msra.mxu0 %v477
    %1193 = vmatpush.bf16.msra.mxu0 %v473
    %1194 = vmatpush.bf16.msra.mxu0 %v469
    %1195 = vmatpush.bf16.msra.mxu0 %v465
    %1196 = vmatmul.bf16.gmra.mxu0 %v1161
    %v1197 = vpop.f32.mrf.mxu0
    %v1198 = vadd.f32 0.0, %v1197
    %v1199 = vpop.f32.mrf.mxu0
    %1200 = vdwg.mxu0
    %1201 = vmatpush.bf16.msra.mxu0 %v494
    %1202 = vmatpush.bf16.msra.mxu0 %v490
    %1203 = vmatpush.bf16.msra.mxu0 %v486
    %1204 = vmatpush.bf16.msra.mxu0 %v482
    %1205 = vmatpush.bf16.msra.mxu0 %v478
    %1206 = vmatpush.bf16.msra.mxu0 %v474
    %1207 = vmatpush.bf16.msra.mxu0 %v470
    %1208 = vmatpush.bf16.msra.mxu0 %v466
    %1209 = vmatmul.bf16.gmra.mxu0 %v1161
    %v1210 = vpop.f32.mrf.mxu0
    %v1211 = vadd.f32 0.0, %v1210
    %v1212 = vpop.f32.mrf.mxu0
    %1213 = vdwg.mxu0
    %v1214 = vadd.f32 %v1157, %v1172
    %v1215 = vadd.f32 %v1158, %v1185
    %v1216 = vadd.f32 %v1159, %v1198
    %v1217 = vadd.f32 %v1160, %v1211
    %v1218 = vxor.u32 %v1214, 2147483648
    %v1219 = vmul.f32 %v1218, 1.442695
    %v1220 = vpow.pop %v1219
    %v1221 = vadd.f32 %v1220, 1.0
    %v1222 = vrcp.pop %v1221
    %v1223 = vmul.f32 %v1221, %v1222
    %v1224 = vsub.f32 1.0, %v1223
    %v1225 = vmul.f32 %v1222, %v1224
    %v1226 = vadd.f32 %v1222, %v1225
    %vm1227 = vweird.f32 %v1221
    %vm1228 = vweird.f32 %v1222
    %vm1229 = vmor %vm1227, %vm1228
    %v1230 = vsel %vm1229, %v1222, %v1226
    %v1231 = vand.u32 2147483647, %v1221
    %vm1232 = vcmp.eq.f32.partialorder %v1231, 8.507059e+37
    %v1233 = vand.u32 %v1221, 2147483648
    %v1234 = vor.u32 1.1754944e-38, %v1233
    %v1235 = vsel %vm1232, %v1234, %v1230
    %v1236 = vmul.f32 1.0, %v1235
    %v1237 = vxor.u32 %v1215, 2147483648
    %v1238 = vmul.f32 %v1237, 1.442695
    %v1239 = vpow.pop %v1238
    %v1240 = vadd.f32 %v1239, 1.0
    %v1241 = vrcp.pop %v1240
    %v1242 = vmul.f32 %v1240, %v1241
    %v1243 = vsub.f32 1.0, %v1242
    %v1244 = vmul.f32 %v1241, %v1243
    %v1245 = vadd.f32 %v1241, %v1244
    %vm1246 = vweird.f32 %v1240
    %vm1247 = vweird.f32 %v1241
    %vm1248 = vmor %vm1246, %vm1247
    %v1249 = vsel %vm1248, %v1241, %v1245
    %v1250 = vand.u32 2147483647, %v1240
    %vm1251 = vcmp.eq.f32.partialorder %v1250, 8.507059e+37
    %v1252 = vand.u32 %v1240, 2147483648
    %v1253 = vor.u32 1.1754944e-38, %v1252
    %v1254 = vsel %vm1251, %v1253, %v1249
    %v1255 = vmul.f32 1.0, %v1254
    %v1256 = vtanh.pop %v1216
    %v1257 = vxor.u32 %v1217, 2147483648
    %v1258 = vmul.f32 %v1257, 1.442695
    %v1259 = vpow.pop %v1258
    %v1260 = vadd.f32 %v1259, 1.0
    %v1261 = vrcp.pop %v1260
    %v1262 = vmul.f32 %v1260, %v1261
    %v1263 = vsub.f32 1.0, %v1262
    %v1264 = vmul.f32 %v1261, %v1263
    %v1265 = vadd.f32 %v1261, %v1264
    %vm1266 = vweird.f32 %v1260
    %vm1267 = vweird.f32 %v1261
    %vm1268 = vmor %vm1266, %vm1267
    %v1269 = vsel %vm1268, %v1261, %v1265
    %v1270 = vand.u32 2147483647, %v1260
    %vm1271 = vcmp.eq.f32.partialorder %v1270, 8.507059e+37
    %v1272 = vand.u32 %v1260, 2147483648
    %v1273 = vor.u32 1.1754944e-38, %v1272
    %v1274 = vsel %vm1271, %v1273, %v1269
    %v1275 = vmul.f32 1.0, %v1274
    %v1276 = vmul.f32 %v1255, %v1151
    %v1277 = vmul.f32 %v1236, %v1256
    %v1278 = vadd.f32 %v1276, %v1277
    %v1279 = vtanh.pop %v1278
    %v1280 = vmul.f32 %v1275, %v1279
    %s1281 = smul.u32 6, 4
    %s1282 = smul.addr %s1281, 8
    %s1283 = scalar_lea.vmem [#allocation2], %s1282
    %v1284 = vld [vmem:[%s1283] sm:$0xff]
    %v1285 = vld [vmem:[%s1283 + $0x8] sm:$0xff]
    %v1286 = vld [vmem:[%s1283 + $0x10] sm:$0xff]
    %v1287 = vld [vmem:[%s1283 + $0x18] sm:$0xff]
    %v1288 = vpack.c.bf16 %v1280, %v1280
    %1289 = vmatpush.bf16.msra.mxu0 %v491
    %1290 = vmatpush.bf16.msra.mxu0 %v487
    %1291 = vmatpush.bf16.msra.mxu0 %v483
    %1292 = vmatpush.bf16.msra.mxu0 %v479
    %1293 = vmatpush.bf16.msra.mxu0 %v475
    %1294 = vmatpush.bf16.msra.mxu0 %v471
    %1295 = vmatpush.bf16.msra.mxu0 %v467
    %1296 = vmatpush.bf16.msra.mxu0 %v463
    %1297 = vmatmul.bf16.gmra.mxu0 %v1288
    %v1298 = vpop.f32.mrf.mxu0
    %v1299 = vadd.f32 0.0, %v1298
    %v1300 = vpop.f32.mrf.mxu0
    %1301 = vdwg.mxu0
    %1302 = vmatpush.bf16.msra.mxu0 %v492
    %1303 = vmatpush.bf16.msra.mxu0 %v488
    %1304 = vmatpush.bf16.msra.mxu0 %v484
    %1305 = vmatpush.bf16.msra.mxu0 %v480
    %1306 = vmatpush.bf16.msra.mxu0 %v476
    %1307 = vmatpush.bf16.msra.mxu0 %v472
    %1308 = vmatpush.bf16.msra.mxu0 %v468
    %1309 = vmatpush.bf16.msra.mxu0 %v464
    %1310 = vmatmul.bf16.gmra.mxu0 %v1288
    %v1311 = vpop.f32.mrf.mxu0
    %v1312 = vadd.f32 0.0, %v1311
    %v1313 = vpop.f32.mrf.mxu0
    %1314 = vdwg.mxu0
    %1315 = vmatpush.bf16.msra.mxu0 %v493
    %1316 = vmatpush.bf16.msra.mxu0 %v489
    %1317 = vmatpush.bf16.msra.mxu0 %v485
    %1318 = vmatpush.bf16.msra.mxu0 %v481
    %1319 = vmatpush.bf16.msra.mxu0 %v477
    %1320 = vmatpush.bf16.msra.mxu0 %v473
    %1321 = vmatpush.bf16.msra.mxu0 %v469
    %1322 = vmatpush.bf16.msra.mxu0 %v465
    %1323 = vmatmul.bf16.gmra.mxu0 %v1288
    %v1324 = vpop.f32.mrf.mxu0
    %v1325 = vadd.f32 0.0, %v1324
    %v1326 = vpop.f32.mrf.mxu0
    %1327 = vdwg.mxu0
    %1328 = vmatpush.bf16.msra.mxu0 %v494
    %1329 = vmatpush.bf16.msra.mxu0 %v490
    %1330 = vmatpush.bf16.msra.mxu0 %v486
    %1331 = vmatpush.bf16.msra.mxu0 %v482
    %1332 = vmatpush.bf16.msra.mxu0 %v478
    %1333 = vmatpush.bf16.msra.mxu0 %v474
    %1334 = vmatpush.bf16.msra.mxu0 %v470
    %1335 = vmatpush.bf16.msra.mxu0 %v466
    %1336 = vmatmul.bf16.gmra.mxu0 %v1288
    %v1337 = vpop.f32.mrf.mxu0
    %v1338 = vadd.f32 0.0, %v1337
    %v1339 = vpop.f32.mrf.mxu0
    %1340 = vdwg.mxu0
    %v1341 = vadd.f32 %v1284, %v1299
    %v1342 = vadd.f32 %v1285, %v1312
    %v1343 = vadd.f32 %v1286, %v1325
    %v1344 = vadd.f32 %v1287, %v1338
    %v1345 = vxor.u32 %v1341, 2147483648
    %v1346 = vmul.f32 %v1345, 1.442695
    %v1347 = vpow.pop %v1346
    %v1348 = vadd.f32 %v1347, 1.0
    %v1349 = vrcp.pop %v1348
    %v1350 = vmul.f32 %v1348, %v1349
    %v1351 = vsub.f32 1.0, %v1350
    %v1352 = vmul.f32 %v1349, %v1351
    %v1353 = vadd.f32 %v1349, %v1352
    %vm1354 = vweird.f32 %v1348
    %vm1355 = vweird.f32 %v1349
    %vm1356 = vmor %vm1354, %vm1355
    %v1357 = vsel %vm1356, %v1349, %v1353
    %v1358 = vand.u32 2147483647, %v1348
    %vm1359 = vcmp.eq.f32.partialorder %v1358, 8.507059e+37
    %v1360 = vand.u32 %v1348, 2147483648
    %v1361 = vor.u32 1.1754944e-38, %v1360
    %v1362 = vsel %vm1359, %v1361, %v1357
    %v1363 = vmul.f32 1.0, %v1362
    %v1364 = vxor.u32 %v1342, 2147483648
    %v1365 = vmul.f32 %v1364, 1.442695
    %v1366 = vpow.pop %v1365
    %v1367 = vadd.f32 %v1366, 1.0
    %v1368 = vrcp.pop %v1367
    %v1369 = vmul.f32 %v1367, %v1368
    %v1370 = vsub.f32 1.0, %v1369
    %v1371 = vmul.f32 %v1368, %v1370
    %v1372 = vadd.f32 %v1368, %v1371
    %vm1373 = vweird.f32 %v1367
    %vm1374 = vweird.f32 %v1368
    %vm1375 = vmor %vm1373, %vm1374
    %v1376 = vsel %vm1375, %v1368, %v1372
    %v1377 = vand.u32 2147483647, %v1367
    %vm1378 = vcmp.eq.f32.partialorder %v1377, 8.507059e+37
    %v1379 = vand.u32 %v1367, 2147483648
    %v1380 = vor.u32 1.1754944e-38, %v1379
    %v1381 = vsel %vm1378, %v1380, %v1376
    %v1382 = vmul.f32 1.0, %v1381
    %v1383 = vtanh.pop %v1343
    %v1384 = vxor.u32 %v1344, 2147483648
    %v1385 = vmul.f32 %v1384, 1.442695
    %v1386 = vpow.pop %v1385
    %v1387 = vadd.f32 %v1386, 1.0
    %v1388 = vrcp.pop %v1387
    %v1389 = vmul.f32 %v1387, %v1388
    %v1390 = vsub.f32 1.0, %v1389
    %v1391 = vmul.f32 %v1388, %v1390
    %v1392 = vadd.f32 %v1388, %v1391
    %vm1393 = vweird.f32 %v1387
    %vm1394 = vweird.f32 %v1388
    %vm1395 = vmor %vm1393, %vm1394
    %v1396 = vsel %vm1395, %v1388, %v1392
    %v1397 = vand.u32 2147483647, %v1387
    %vm1398 = vcmp.eq.f32.partialorder %v1397, 8.507059e+37
    %v1399 = vand.u32 %v1387, 2147483648
    %v1400 = vor.u32 1.1754944e-38, %v1399
    %v1401 = vsel %vm1398, %v1400, %v1396
    %v1402 = vmul.f32 1.0, %v1401
    %v1403 = vmul.f32 %v1382, %v1278
    %v1404 = vmul.f32 %v1363, %v1383
    %v1405 = vadd.f32 %v1403, %v1404
    %v1406 = vtanh.pop %v1405
    %v1407 = vmul.f32 %v1402, %v1406
    %s1408 = smul.u32 7, 4
    %s1409 = smul.addr %s1408, 8
    %s1410 = scalar_lea.vmem [#allocation2], %s1409
    %v1411 = vld [vmem:[%s1410] sm:$0xff]
    %v1412 = vld [vmem:[%s1410 + $0x8] sm:$0xff]
    %v1413 = vld [vmem:[%s1410 + $0x10] sm:$0xff]
    %v1414 = vld [vmem:[%s1410 + $0x18] sm:$0xff]
    %v1415 = vpack.c.bf16 %v1407, %v1407
    %1416 = vmatpush.bf16.msra.mxu0 %v491
    %1417 = vmatpush.bf16.msra.mxu0 %v487
    %1418 = vmatpush.bf16.msra.mxu0 %v483
    %1419 = vmatpush.bf16.msra.mxu0 %v479
    %1420 = vmatpush.bf16.msra.mxu0 %v475
    %1421 = vmatpush.bf16.msra.mxu0 %v471
    %1422 = vmatpush.bf16.msra.mxu0 %v467
    %1423 = vmatpush.bf16.msra.mxu0 %v463
    %1424 = vmatmul.bf16.gmra.mxu0 %v1415
    %v1425 = vpop.f32.mrf.mxu0
    %v1426 = vadd.f32 0.0, %v1425
    %v1427 = vpop.f32.mrf.mxu0
    %1428 = vdwg.mxu0
    %1429 = vmatpush.bf16.msra.mxu0 %v492
    %1430 = vmatpush.bf16.msra.mxu0 %v488
    %1431 = vmatpush.bf16.msra.mxu0 %v484
    %1432 = vmatpush.bf16.msra.mxu0 %v480
    %1433 = vmatpush.bf16.msra.mxu0 %v476
    %1434 = vmatpush.bf16.msra.mxu0 %v472
    %1435 = vmatpush.bf16.msra.mxu0 %v468
    %1436 = vmatpush.bf16.msra.mxu0 %v464
    %1437 = vmatmul.bf16.gmra.mxu0 %v1415
    %v1438 = vpop.f32.mrf.mxu0
    %v1439 = vadd.f32 0.0, %v1438
    %v1440 = vpop.f32.mrf.mxu0
    %1441 = vdwg.mxu0
    %1442 = vmatpush.bf16.msra.mxu0 %v493
    %1443 = vmatpush.bf16.msra.mxu0 %v489
    %1444 = vmatpush.bf16.msra.mxu0 %v485
    %1445 = vmatpush.bf16.msra.mxu0 %v481
    %1446 = vmatpush.bf16.msra.mxu0 %v477
    %1447 = vmatpush.bf16.msra.mxu0 %v473
    %1448 = vmatpush.bf16.msra.mxu0 %v469
    %1449 = vmatpush.bf16.msra.mxu0 %v465
    %1450 = vmatmul.bf16.gmra.mxu0 %v1415
    %v1451 = vpop.f32.mrf.mxu0
    %v1452 = vadd.f32 0.0, %v1451
    %v1453 = vpop.f32.mrf.mxu0
    %1454 = vdwg.mxu0
    %1455 = vmatpush.bf16.msra.mxu0 %v494
    %1456 = vmatpush.bf16.msra.mxu0 %v490
    %1457 = vmatpush.bf16.msra.mxu0 %v486
    %1458 = vmatpush.bf16.msra.mxu0 %v482
    %1459 = vmatpush.bf16.msra.mxu0 %v478
    %1460 = vmatpush.bf16.msra.mxu0 %v474
    %1461 = vmatpush.bf16.msra.mxu0 %v470
    %1462 = vmatpush.bf16.msra.mxu0 %v466
    %1463 = vmatmul.bf16.gmra.mxu0 %v1415
    %v1464 = vpop.f32.mrf.mxu0
    %v1465 = vadd.f32 0.0, %v1464
    %v1466 = vpop.f32.mrf.mxu0
    %1467 = vdwg.mxu0
    %v1468 = vadd.f32 %v1411, %v1426
    %v1469 = vadd.f32 %v1412, %v1439
    %v1470 = vadd.f32 %v1413, %v1452
    %v1471 = vadd.f32 %v1414, %v1465
    %v1472 = vxor.u32 %v1468, 2147483648
    %v1473 = vmul.f32 %v1472, 1.442695
    %v1474 = vpow.pop %v1473
    %v1475 = vadd.f32 %v1474, 1.0
    %v1476 = vrcp.pop %v1475
    %v1477 = vmul.f32 %v1475, %v1476
    %v1478 = vsub.f32 1.0, %v1477
    %v1479 = vmul.f32 %v1476, %v1478
    %v1480 = vadd.f32 %v1476, %v1479
    %vm1481 = vweird.f32 %v1475
    %vm1482 = vweird.f32 %v1476
    %vm1483 = vmor %vm1481, %vm1482
    %v1484 = vsel %vm1483, %v1476, %v1480
    %v1485 = vand.u32 2147483647, %v1475
    %vm1486 = vcmp.eq.f32.partialorder %v1485, 8.507059e+37
    %v1487 = vand.u32 %v1475, 2147483648
    %v1488 = vor.u32 1.1754944e-38, %v1487
    %v1489 = vsel %vm1486, %v1488, %v1484
    %v1490 = vmul.f32 1.0, %v1489
    %v1491 = vxor.u32 %v1469, 2147483648
    %v1492 = vmul.f32 %v1491, 1.442695
    %v1493 = vpow.pop %v1492
    %v1494 = vadd.f32 %v1493, 1.0
    %v1495 = vrcp.pop %v1494
    %v1496 = vmul.f32 %v1494, %v1495
    %v1497 = vsub.f32 1.0, %v1496
    %v1498 = vmul.f32 %v1495, %v1497
    %v1499 = vadd.f32 %v1495, %v1498
    %vm1500 = vweird.f32 %v1494
    %vm1501 = vweird.f32 %v1495
    %vm1502 = vmor %vm1500, %vm1501
    %v1503 = vsel %vm1502, %v1495, %v1499
    %v1504 = vand.u32 2147483647, %v1494
    %vm1505 = vcmp.eq.f32.partialorder %v1504, 8.507059e+37
    %v1506 = vand.u32 %v1494, 2147483648
    %v1507 = vor.u32 1.1754944e-38, %v1506
    %v1508 = vsel %vm1505, %v1507, %v1503
    %v1509 = vmul.f32 1.0, %v1508
    %v1510 = vtanh.pop %v1470
    %v1511 = vxor.u32 %v1471, 2147483648
    %v1512 = vmul.f32 %v1511, 1.442695
    %v1513 = vpow.pop %v1512
    %v1514 = vadd.f32 %v1513, 1.0
    %v1515 = vrcp.pop %v1514
    %v1516 = vmul.f32 %v1514, %v1515
    %v1517 = vsub.f32 1.0, %v1516
    %v1518 = vmul.f32 %v1515, %v1517
    %v1519 = vadd.f32 %v1515, %v1518
    %vm1520 = vweird.f32 %v1514
    %vm1521 = vweird.f32 %v1515
    %vm1522 = vmor %vm1520, %vm1521
    %v1523 = vsel %vm1522, %v1515, %v1519
    %v1524 = vand.u32 2147483647, %v1514
    %vm1525 = vcmp.eq.f32.partialorder %v1524, 8.507059e+37
    %v1526 = vand.u32 %v1514, 2147483648
    %v1527 = vor.u32 1.1754944e-38, %v1526
    %v1528 = vsel %vm1525, %v1527, %v1523
    %v1529 = vmul.f32 1.0, %v1528
    %v1530 = vmul.f32 %v1509, %v1405
    %v1531 = vmul.f32 %v1490, %v1510
    %v1532 = vadd.f32 %v1530, %v1531
    %v1533 = vtanh.pop %v1532
    %v1534 = vmul.f32 %v1529, %v1533
    %v1535 = vpack.c.bf16 %v1534, %v1534
    %v1536 = vld [vmem:[#allocation8] sm:$0xf]
    %v1537 = vld [vmem:[#allocation8 + $0x4] sm:$0xf]
    %v1538 = vld [vmem:[#allocation8 + $0x8] sm:$0xf]
    %v1539 = vld [vmem:[#allocation8 + $0xc] sm:$0xf]
    %v1540 = vld [vmem:[#allocation8 + $0x10] sm:$0xf]
    %v1541 = vld [vmem:[#allocation8 + $0x14] sm:$0xf]
    %v1542 = vld [vmem:[#allocation8 + $0x18] sm:$0xf]
    %v1543 = vld [vmem:[#allocation8 + $0x1c] sm:$0xf]
    %v1544 = vld [vmem:[#allocation8 + $0x20] sm:$0xf]
    %v1545 = vld [vmem:[#allocation8 + $0x24] sm:$0xf]
    %v1546 = vld [vmem:[#allocation8 + $0x28] sm:$0xf]
    %v1547 = vld [vmem:[#allocation8 + $0x2c] sm:$0xf]
    %v1548 = vld [vmem:[#allocation8 + $0x30] sm:$0xf]
    %v1549 = vld [vmem:[#allocation8 + $0x34] sm:$0xf]
    %v1550 = vld [vmem:[#allocation8 + $0x38] sm:$0xf]
    %v1551 = vld [vmem:[#allocation8 + $0x3c] sm:$0xf]
    %v1552 = vld [vmem:[%s5] sm:$0x1]
    %v1554 = vperm.slane %v1552, 0
    %v1572 = vunpack.c.l.b16 %v1536
    %v1573 = vunpack.c.l.b16 %v1537
    %v1574 = vunpack.c.l.b16 %v1538
    %v1575 = vunpack.c.l.b16 %v1539
    %v1576 = vunpack.c.l.b16 %v1540
    %v1577 = vunpack.c.l.b16 %v1541
    %v1578 = vunpack.c.l.b16 %v1542
    %v1579 = vunpack.c.l.b16 %v1543
    %v1580 = vunpack.c.l.b16 %v1544
    %v1581 = vunpack.c.l.b16 %v1545
    %v1582 = vunpack.c.l.b16 %v1546
    %v1583 = vunpack.c.l.b16 %v1547
    %v1584 = vunpack.c.l.b16 %v1548
    %v1585 = vunpack.c.l.b16 %v1549
    %v1586 = vunpack.c.l.b16 %v1550
    %v1587 = vunpack.c.l.b16 %v1551
    %v1588 = vpack.c.b16 %v1573, %v1572
    %v1589 = vpack.c.b16 %v1575, %v1574
    %v1590 = vpack.c.b16 %v1577, %v1576
    %v1591 = vpack.c.b16 %v1579, %v1578
    %v1592 = vpack.c.b16 %v1581, %v1580
    %v1593 = vpack.c.b16 %v1583, %v1582
    %v1594 = vpack.c.b16 %v1585, %v1584
    %v1595 = vpack.c.b16 %v1587, %v1586
    %1604 = vmatpush.bf16.msra.mxu0 %v1595
    %1605 = vmatpush.bf16.msra.mxu0 %v1594
    %1606 = vmatpush.bf16.msra.mxu0 %v1593
    %1607 = vmatpush.bf16.msra.mxu0 %v1592
    %1608 = vmatpush.bf16.msra.mxu0 %v1591
    %1609 = vmatpush.bf16.msra.mxu0 %v1590
    %1610 = vmatpush.bf16.msra.mxu0 %v1589
    %1611 = vmatpush.bf16.msra.mxu0 %v1588
    %1612 = vmatmul.bf16.gmra.mxu0 %v1535
    %v1613 = vpop.f32.mrf.mxu0
    %v1614 = vadd.f32 %v1554, %v1613
    %v1615 = vpop.f32.mrf.mxu0
    %1616 = vdwg.mxu0
    %1617 = vst [vmem:[#allocation9] sm:$0xff] %v1614
    // Predicated region
    $region38: #{tpu_custom_call.1} parent=1 // pred_check
      _
    $region39: #{tpu_custom_call.1} parent=1 // pred_check_branch
      %1619 = sbr.rel (0) target = $region41
    $region40: #{tpu_custom_call.1} parent=1 // pred_region
      %1621 = vsyncadd [#allocation5], 0
      %s1623 = sshll.u32 [#allocation9], 4
      %s1624 = int_to_ptr.vmem [resolvable:$true] %s1623
      %s1625 = sshll.u32 %s6, 4
      %s1626 = int_to_ptr.hbm [resolvable:$true] %s1625
      %1628 = dma.vmem_to_hbm [thread:$0]  %s1624, 128, %s1626, [#allocation5]
    $region41: #{tpu_custom_call.1} parent=1 // pred_fallthru
      _
    // Predicated region
    $region42: #{tpu_custom_call.1} parent=1 // pred_check
      _
    $region43: #{tpu_custom_call.1} parent=1 // pred_check_branch
      %1630 = sbr.rel (0) target = $region45
    $region44: #{tpu_custom_call.1} parent=1 // pred_region
      %1632 = dma.done [#allocation5], 128
    $region45: #{tpu_custom_call.1} parent=1 // pred_fallthru
      _
    %1633 = vsyncpa [#allocation4], 1
    %1634 = vsyncpa [#allocation7], 1
    %1635 = vsyncpa [#allocation5], 1

</llo_original>
